<compile_context>
chip_gen: v7x
topology: tpu7x:2x2x1
jax: 0.10.0
libtpu: 0.0.40
codegen_flags: <defaults>
</compile_context>

<pallas_src>
import functools

import jax
import jax.numpy as jnp
from jax.experimental import pallas as pl
from jax.experimental.pallas import tpu as pltpu


# ---------------------------------------------------------------------------
# Kernel 1: fused im2col conv3x3(pad=1) + bias + ReLU + MaxPool2d(2)
#           (one image per grid step, single lane-dense output store)
# ---------------------------------------------------------------------------
def conv_relu_pool_kernel(p_ref, w_ref, b_ref, o_ref):
    # p_ref : (1, 4, HW, 27)  im2col patches; axis 1 = position inside the 2x2 pool window
    # w_ref : (27, Cout)      3x3 taps flattened (kh, kw, cin)
    # b_ref : (1, Cout)
    # o_ref : (1, HW, Cout)   pooled output, rows in (h, w) raster order (NHWC flatten)
    bias = b_ref[...]
    best = None
    for t in range(4):
        z = jnp.dot(p_ref[0, t], w_ref[...], preferred_element_type=jnp.float32)
        z = jnp.maximum(z + bias, 0.0)                      # bias + ReLU
        best = z if best is None else jnp.maximum(best, z)  # 2x2 max-pool
    o_ref[0] = best.astype(o_ref.dtype)


def conv_relu_pool(patches, w, b):
    bsz, _, hw, kin = patches.shape
    cout = w.shape[-1]
    return pl.pallas_call(
        conv_relu_pool_kernel,
        out_shape=jax.ShapeDtypeStruct((bsz, hw, cout), jnp.float32),
        grid_spec=pltpu.PrefetchScalarGridSpec(
            num_scalar_prefetch=0,
            grid=(bsz,),
            in_specs=[
                pl.BlockSpec((1, 4, hw, kin), lambda bi: (bi, 0, 0, 0)),
                pl.BlockSpec((kin, cout), lambda bi: (0, 0)),
                pl.BlockSpec((1, cout), lambda bi: (0, 0)),
            ],
            out_specs=pl.BlockSpec((1, hw, cout), lambda bi: (bi, 0, 0)),
        ),
        compiler_params=pltpu.CompilerParams(
            dimension_semantics=("parallel",)),
    )(patches, w, b.reshape(1, -1))


# ---------------------------------------------------------------------------
# Kernel 2: tiled Linear  y = act(x @ W + b)
#           grid = (N tiles [parallel], K tiles [arbitrary]); bf16 weights, f32 accum
#           accumulates directly into the resident output block.
# ---------------------------------------------------------------------------
def linear_kernel(x_ref, w_ref, b_ref, o_ref, *, activation):
    k = pl.program_id(1)

    @pl.when(k == 0)
    def _():
        o_ref[...] = jnp.zeros_like(o_ref)

    o_ref[...] += jnp.dot(x_ref[...].astype(w_ref.dtype), w_ref[...],
                          preferred_element_type=jnp.float32)

    @pl.when(k == pl.num_programs(1) - 1)
    def _():
        o_ref[...] = activation(o_ref[...] + b_ref[...])


def linear(x, w, b, *, activation, tk, tn):
    bsz, k_dim = x.shape
    _, n_dim = w.shape
    assert k_dim % tk == 0 and n_dim % tn == 0
    act = {"relu": lambda z: jnp.maximum(z, 0.0),
           "sigmoid": jax.nn.sigmoid}[activation]
    kern = functools.partial(linear_kernel, activation=act)
    return pl.pallas_call(
        kern,
        out_shape=jax.ShapeDtypeStruct((bsz, n_dim), jnp.float32),
        grid_spec=pltpu.PrefetchScalarGridSpec(
            num_scalar_prefetch=0,
            grid=(n_dim // tn, k_dim // tk),
            in_specs=[
                pl.BlockSpec((bsz, tk), lambda n, k: (0, k)),
                pl.BlockSpec((tk, tn), lambda n, k: (k, n)),
                pl.BlockSpec((1, tn), lambda n, k: (0, n)),
            ],
            out_specs=pl.BlockSpec((bsz, tn), lambda n, k: (0, n)),
        ),
        compiler_params=pltpu.CompilerParams(
            dimension_semantics=("parallel", "arbitrary"),
            vmem_limit_bytes=48 << 20),
    )(x, w, b.reshape(1, -1))


# ---------------------------------------------------------------------------
# Wrapper-side glue (layout plumbing only; hot paths are the Pallas kernels)
# ---------------------------------------------------------------------------
def im2col_pool_patches(x_nchw):
    """NCHW image -> (B, 4, (H//2)*(W//2), 9*Cin) patches for a 3x3/pad=1 conv,
    grouped so axis 1 indexes the position inside each 2x2 max-pool window."""
    b, c, h, w = x_nchw.shape
    x_nhwc = jnp.transpose(x_nchw, (0, 2, 3, 1))
    xp = jnp.pad(x_nhwc, ((0, 0), (1, 1), (1, 1), (0, 0)))
    cols = jnp.concatenate(
        [xp[:, dh:dh + h, dw:dw + w, :] for dh in range(3) for dw in range(3)],
        axis=-1)                                                  # (B, H, W, 9*Cin)
    ho, wo = h // 2, w // 2
    patches = cols.reshape(b, ho, 2, wo, 2, 9 * c)
    patches = patches.transpose(0, 2, 4, 1, 3, 5).reshape(b, 4, ho * wo, 9 * c)
    return patches


def prepare_params(conv_w_oihw, conv_b, fc1_w, fc1_b, fc2_w, fc2_b):
    """Convert PyTorch-layout weights into the layouts the kernels consume."""
    cout = conv_w_oihw.shape[0]
    hw = 49
    # conv (Cout, Cin, 3, 3) -> (27, Cout), rows ordered (kh, kw, cin)
    conv_w27 = jnp.transpose(conv_w_oihw, (2, 3, 1, 0)).reshape(-1, cout)
    # fc1 (4096, 25088) -> (25088, 4096), rows permuted NCHW->NHWC flatten order, bf16
    fc1_wt = fc1_w.T.reshape(cout, hw, -1).transpose(1, 0, 2).reshape(cout * hw, -1)
    # fc2 (1274, 4096) -> (4096, 1280) with lane-dense N padding, bf16
    n_out = fc2_w.shape[0]
    n_pad = ((n_out + 127) // 128) * 128
    fc2_wt = jnp.pad(fc2_w.T, ((0, 0), (0, n_pad - n_out)))
    fc2_bp = jnp.pad(fc2_b, (0, n_pad - n_out))
    return {
        "conv_w": conv_w27.astype(jnp.float32),
        "conv_b": conv_b.astype(jnp.float32),
        "fc1_w": fc1_wt.astype(jnp.bfloat16),
        "fc1_b": fc1_b.astype(jnp.float32),
        "fc2_w": fc2_wt.astype(jnp.bfloat16),
        "fc2_b": fc2_bp.astype(jnp.float32),
    }


def vgg_forward(x_nchw, params):
    bsz = x_nchw.shape[0]
    patches = im2col_pool_patches(x_nchw)
    # features: conv3x3 + relu + maxpool2 -> (B, 49, 512), rows in (h, w) raster order
    pooled = conv_relu_pool(patches, params["conv_w"], params["conv_b"])
    # flatten in NHWC order; fc1_w rows were pre-permuted to match (no transpose needed)
    feat = pooled.reshape(bsz, -1)                           # (B, 25088)
    # yolo head: Linear(25088,4096)+ReLU, Dropout (identity, eval), Linear(4096,1274), sigmoid
    h = linear(feat, params["fc1_w"], params["fc1_b"], activation="relu",
               tk=1792, tn=2048)
    logits = linear(h, params["fc2_w"], params["fc2_b"], activation="sigmoid",
                    tk=2048, tn=640)
    logits = logits[:, :1274]                                # drop N padding
    return logits.reshape(-1, 7, 7, 26)


if __name__ == "__main__":
    CIN, COUT = 3, 512
    H = W = 14                      # 14 -> (conv same) 14 -> (pool/2) 7 ; 7*7*512 = 25088
    B = 2

    key = jax.random.PRNGKey(0)
    k_conv, k_fc1, k_fc2, k_x = jax.random.split(key, 4)

    # PyTorch-layout weights (Linear: normal(0, 0.01), zero bias, per _initialize_weights)
    conv_w = jax.random.normal(k_conv, (COUT, CIN, 3, 3), jnp.float32) * 0.05
    conv_b = jnp.zeros((COUT,), jnp.float32)
    fc1_w = jax.random.normal(k_fc1, (4096, 25088), jnp.float32) * 0.01
    fc1_b = jnp.zeros((4096,), jnp.float32)
    fc2_w = jax.random.normal(k_fc2, (1274, 4096), jnp.float32) * 0.01
    fc2_b = jnp.zeros((1274,), jnp.float32)

    params = prepare_params(conv_w, conv_b, fc1_w, fc1_b, fc2_w, fc2_b)

    x = jax.random.normal(k_x, (B, CIN, H, W), jnp.float32)   # NCHW, like PyTorch

    out = jax.block_until_ready(vgg_forward(x, params))
    assert out.shape == (B, 7, 7, 26), out.shape
    assert bool(jnp.all(jnp.isfinite(out)))
    assert bool(jnp.all((out >= 0.0) & (out <= 1.0)))

    # pure-JAX reference (f32 weights, PyTorch semantics) for a numerical sanity check
    def reference(xi):
        xp = jnp.pad(jnp.transpose(xi, (0, 2, 3, 1)), ((0, 0), (1, 1), (1, 1), (0, 0)))
        cols = jnp.concatenate(
            [xp[:, dh:dh + H, dw:dw + W, :] for dh in range(3) for dw in range(3)],
            axis=-1)
        w27 = jnp.transpose(conv_w, (2, 3, 1, 0)).reshape(27, COUT)
        conv = jnp.maximum(jnp.einsum("bhwk,kc->bhwc", cols, w27) + conv_b, 0.0)
        pooled = conv.reshape(B, 7, 2, 7, 2, COUT).max(axis=(2, 4))   # (B,7,7,C)
        feat = jnp.transpose(pooled, (0, 3, 1, 2)).reshape(B, -1)     # NCHW flatten
        hh = jnp.maximum(feat @ fc1_w.T + fc1_b, 0.0)
        logits = hh @ fc2_w.T + fc2_b
        return jax.nn.sigmoid(logits).reshape(-1, 7, 7, 26)

    ref = jax.block_until_ready(reference(x))
    err = float(jnp.max(jnp.abs(out - ref)))
    assert err < 2e-2, f"max |out - ref| = {err}"
    print("KERNEL_OK")
</pallas_src>

<mosaic_0001>
module attributes {stable_mosaic.version = 11 : i64} {
  func.func @conv_relu_pool_kernel(%arg0: i32, %arg1: memref<1x4x49x27xf32, #tpu.memory_space<vmem>>, %arg2: memref<27x512xf32, #tpu.memory_space<vmem>>, %arg3: memref<1x512xf32, #tpu.memory_space<vmem>>, %arg4: memref<1x49x512xf32, #tpu.memory_space<vmem>>) attributes {dimension_semantics = [#tpu.dimension_semantics<parallel>], iteration_bounds = array<i64: 2>, scalar_prefetch = 0 : i64, scratch_operands = 0 : i64, tpu.core_type = #tpu.core_type<tc>, window_params = [{transform_indices = @transform_0, window_bounds = array<i64: 1, 4, 49, 27>}, {pipeline_mode = #tpu.pipeline_mode<synchronous>, transform_indices = @transform_1, window_bounds = array<i64: 27, 512>}, {pipeline_mode = #tpu.pipeline_mode<synchronous>, transform_indices = @transform_2, window_bounds = array<i64: 1, 512>}, {transform_indices = @transform_3, window_bounds = array<i64: 1, 49, 512>}]} {
    %c0 = arith.constant 0 : index
    %c0_0 = arith.constant 0 : index
    %0 = vector.load %arg3[%c0, %c0_0] : memref<1x512xf32, #tpu.memory_space<vmem>>, vector<1x512xf32>
    %c0_1 = arith.constant 0 : index
    %c0_2 = arith.constant 0 : index
    %c0_3 = arith.constant 0 : index
    %c0_4 = arith.constant 0 : index
    %1 = vector.load %arg1[%c0_1, %c0_2, %c0_3, %c0_4] : memref<1x4x49x27xf32, #tpu.memory_space<vmem>>, vector<1x1x49x27xf32>
    %2 = vector.shape_cast %1 : vector<1x1x49x27xf32> to vector<49x27xf32>
    %c0_5 = arith.constant 0 : index
    %c0_6 = arith.constant 0 : index
    %3 = vector.load %arg2[%c0_5, %c0_6] : memref<27x512xf32, #tpu.memory_space<vmem>>, vector<27x512xf32>
    %cst = arith.constant dense<0.000000e+00> : vector<49x512xf32>
    %4 = tpu.matmul %2, %3, %cst {dimension_numbers = #tpu.dot_dimension_numbers<[1], [0], [0], [1], [0, 0, 1, 1], [], []>} : vector<49x27xf32>, vector<27x512xf32>, vector<49x512xf32> -> vector<49x512xf32>
    %5 = vector.broadcast %0 : vector<1x512xf32> to vector<49x512xf32>
    %6 = arith.addf %4, %5 : vector<49x512xf32>
    %cst_7 = arith.constant 0.000000e+00 : f32
    %7 = vector.broadcast %cst_7 : f32 to vector<49x512xf32>
    %8 = arith.maximumf %6, %7 : vector<49x512xf32>
    %c0_8 = arith.constant 0 : index
    %c1 = arith.constant 1 : index
    %c0_9 = arith.constant 0 : index
    %c0_10 = arith.constant 0 : index
    %9 = vector.load %arg1[%c0_8, %c1, %c0_9, %c0_10] : memref<1x4x49x27xf32, #tpu.memory_space<vmem>>, vector<1x1x49x27xf32>
    %10 = vector.shape_cast %9 : vector<1x1x49x27xf32> to vector<49x27xf32>
    %c0_11 = arith.constant 0 : index
    %c0_12 = arith.constant 0 : index
    %11 = vector.load %arg2[%c0_11, %c0_12] : memref<27x512xf32, #tpu.memory_space<vmem>>, vector<27x512xf32>
    %cst_13 = arith.constant dense<0.000000e+00> : vector<49x512xf32>
    %12 = tpu.matmul %10, %11, %cst_13 {dimension_numbers = #tpu.dot_dimension_numbers<[1], [0], [0], [1], [0, 0, 1, 1], [], []>} : vector<49x27xf32>, vector<27x512xf32>, vector<49x512xf32> -> vector<49x512xf32>
    %13 = vector.broadcast %0 : vector<1x512xf32> to vector<49x512xf32>
    %14 = arith.addf %12, %13 : vector<49x512xf32>
    %cst_14 = arith.constant 0.000000e+00 : f32
    %15 = vector.broadcast %cst_14 : f32 to vector<49x512xf32>
    %16 = arith.maximumf %14, %15 : vector<49x512xf32>
    %17 = arith.maximumf %8, %16 : vector<49x512xf32>
    %c0_15 = arith.constant 0 : index
    %c2 = arith.constant 2 : index
    %c0_16 = arith.constant 0 : index
    %c0_17 = arith.constant 0 : index
    %18 = vector.load %arg1[%c0_15, %c2, %c0_16, %c0_17] : memref<1x4x49x27xf32, #tpu.memory_space<vmem>>, vector<1x1x49x27xf32>
    %19 = vector.shape_cast %18 : vector<1x1x49x27xf32> to vector<49x27xf32>
    %c0_18 = arith.constant 0 : index
    %c0_19 = arith.constant 0 : index
    %20 = vector.load %arg2[%c0_18, %c0_19] : memref<27x512xf32, #tpu.memory_space<vmem>>, vector<27x512xf32>
    %cst_20 = arith.constant dense<0.000000e+00> : vector<49x512xf32>
    %21 = tpu.matmul %19, %20, %cst_20 {dimension_numbers = #tpu.dot_dimension_numbers<[1], [0], [0], [1], [0, 0, 1, 1], [], []>} : vector<49x27xf32>, vector<27x512xf32>, vector<49x512xf32> -> vector<49x512xf32>
    %22 = vector.broadcast %0 : vector<1x512xf32> to vector<49x512xf32>
    %23 = arith.addf %21, %22 : vector<49x512xf32>
    %cst_21 = arith.constant 0.000000e+00 : f32
    %24 = vector.broadcast %cst_21 : f32 to vector<49x512xf32>
    %25 = arith.maximumf %23, %24 : vector<49x512xf32>
    %26 = arith.maximumf %17, %25 : vector<49x512xf32>
    %c0_22 = arith.constant 0 : index
    %c3 = arith.constant 3 : index
    %c0_23 = arith.constant 0 : index
    %c0_24 = arith.constant 0 : index
    %27 = vector.load %arg1[%c0_22, %c3, %c0_23, %c0_24] : memref<1x4x49x27xf32, #tpu.memory_space<vmem>>, vector<1x1x49x27xf32>
    %28 = vector.shape_cast %27 : vector<1x1x49x27xf32> to vector<49x27xf32>
    %c0_25 = arith.constant 0 : index
    %c0_26 = arith.constant 0 : index
    %29 = vector.load %arg2[%c0_25, %c0_26] : memref<27x512xf32, #tpu.memory_space<vmem>>, vector<27x512xf32>
    %cst_27 = arith.constant dense<0.000000e+00> : vector<49x512xf32>
    %30 = tpu.matmul %28, %29, %cst_27 {dimension_numbers = #tpu.dot_dimension_numbers<[1], [0], [0], [1], [0, 0, 1, 1], [], []>} : vector<49x27xf32>, vector<27x512xf32>, vector<49x512xf32> -> vector<49x512xf32>
    %31 = vector.broadcast %0 : vector<1x512xf32> to vector<49x512xf32>
    %32 = arith.addf %30, %31 : vector<49x512xf32>
    %cst_28 = arith.constant 0.000000e+00 : f32
    %33 = vector.broadcast %cst_28 : f32 to vector<49x512xf32>
    %34 = arith.maximumf %32, %33 : vector<49x512xf32>
    %35 = arith.maximumf %26, %34 : vector<49x512xf32>
    %c0_29 = arith.constant 0 : index
    %c0_30 = arith.constant 0 : index
    %c0_31 = arith.constant 0 : index
    %36 = vector.load %arg4[%c0_29, %c0_30, %c0_31] : memref<1x49x512xf32, #tpu.memory_space<vmem>>, vector<1x49x512xf32>
    %37 = vector.shape_cast %36 : vector<1x49x512xf32> to vector<49x512xf32>
    %38 = vector.shape_cast %35 : vector<49x512xf32> to vector<1x49x512xf32>
    tpu.vector_store %arg4[%c0_29, %c0_30, %c0_31], %38 {strides = array<i32>} : memref<1x49x512xf32, #tpu.memory_space<vmem>>, vector<1x49x512xf32>,
    return
  }
  func.func @transform_0(%arg0: i32) -> (i32, i32, i32, i32) {
    %c0_i32 = arith.constant 0 : i32
    %c0_i32_0 = arith.constant 0 : i32
    %c0_i32_1 = arith.constant 0 : i32
    %c0_i32_2 = arith.constant 0 : i32
    return %arg0, %c0_i32, %c0_i32_0, %c0_i32_1 : i32, i32, i32, i32
  }
  func.func @transform_1(%arg0: i32) -> (i32, i32) {
    %c0_i32 = arith.constant 0 : i32
    %c0_i32_0 = arith.constant 0 : i32
    %c0_i32_1 = arith.constant 0 : i32
    return %c0_i32, %c0_i32_0 : i32, i32
  }
  func.func @transform_2(%arg0: i32) -> (i32, i32) {
    %c0_i32 = arith.constant 0 : i32
    %c0_i32_0 = arith.constant 0 : i32
    %c0_i32_1 = arith.constant 0 : i32
    return %c0_i32, %c0_i32_0 : i32, i32
  }
  func.func @transform_3(%arg0: i32) -> (i32, i32, i32) {
    %c0_i32 = arith.constant 0 : i32
    %c0_i32_0 = arith.constant 0 : i32
    %c0_i32_1 = arith.constant 0 : i32
    return %arg0, %c0_i32, %c0_i32_0 : i32, i32, i32
  }
}

</mosaic_0001>

<llo_original>
// kernel: tpu_custom_call.1
$region0: #{tpu_custom_call.1}
  #allocation0 [shape = 'u32[]', space=smem, size = 0x4, offset = 0x4, fixed_abs, tag = 'smem constant byte address 0x4 - core index']
  #allocation1 [shape = 'u32[144,128]{1,0:T(1,128)}', space=vmem, size = 0x12000, scoped, tag = 'internal scratch']
  %s0 = inlined_call_operand.vmem [shape: f32[2,4,49,27], index: 0, kind: input, shape index: {}]
  %s1 = inlined_call_operand.vmem [shape: f32[27,512], index: 1, kind: input, shape index: {}]
  %s2 = inlined_call_operand.vmem [shape: f32[1,512], index: 2, kind: input, shape index: {}]
  %s3 = inlined_call_operand.vmem [shape: f32[2,49,512], index: 3, kind: output, shape index: {}]
  %s4 = sld [smem:[#allocation0]]
  $region45: #{tpu_custom_call.1} parent=0
    _
  %s6 = ssub.s32 1, %s4
  %s7 = scalar_select 0, %s6, %s4
  loop: start=0, step=1, limit=4
  $region2: #{tpu_custom_call.1} parent=0 // loop_pre_header
    _
  $region3: #{tpu_custom_call.1} parent=0 // loop_header
    %s9 = sphi 0, %s13
    %p10 = scmp.ge.s32.totalorder %s9, 4
    %s19 = sphi 0, %s21
    %s22 = sphi 0, %s19
    %s23 = sphi 0, %s22
    %s39 = sphi 0, %s23
    %s43 = sphi 0, %s43
    %s45 = sphi 0, %s43
    %s46 = sphi 0, %s45
    %s60 = sphi 0, %s46
    %s64 = sphi 0, %s64
    %s66 = sphi 0, %s64
    %s67 = sphi 0, %s66
    %s81 = sphi 0, %s67
    %s87 = sphi 0, %s89
    %s90 = sphi 0, %s87
    %s91 = sphi 0, %s90
    %s107 = sphi 0, %s91
  $region4: #{tpu_custom_call.1} parent=0 // loop_header_branch
    %12 = sbr.rel (%p10) target = $region8
  $region5: #{tpu_custom_call.1} parent=0 // loop_body
    %s14 = ssub.s32 %s9, 1
    %s15 = ssub.s32 %s9, 2
    %s16 = sadd.s32 %s9, 1
    %s17 = ssub.s32 %s9, %s16
    %p18 = scmp.eq.s32.totalorder %s17, 0
    %s20 = sadd.s32 %s19, 1
    %s21 = scalar_select %p18, %s19, %s20
    %p24 = pneg %p18
    %p25 = scmp.eq.s32.totalorder %s9, 1
    %p26 = por %p24, %p25
    %p27 = scmp.ne.s32.totalorder %s19, %s22
    %p28 = scmp.eq.s32.totalorder %s9, 0
    %p29 = por %p27, %p28
    %p30 = scmp.ne.s32.totalorder %s19, %s22
    %p31 = scmp.eq.s32.totalorder %s14, 1
    %p32 = por %p30, %p31
    %p33 = scmp.ne.s32.totalorder %s22, %s23
    %p34 = scmp.eq.s32.totalorder %s14, 0
    %p35 = por %p33, %p34
    %p36 = scmp.ne.s32.totalorder %s22, %s23
    %p37 = scmp.eq.s32.totalorder %s15, 1
    %p38 = por %p36, %p37
    %p40 = scmp.ne.s32.totalorder %s23, %s39
    %p41 = scmp.eq.s32.totalorder %s15, 0
    %p42 = por %p40, %p41
    %s44 = sadd.s32 %s43, 1
    %p47 = scmp.eq.s32.totalorder %s9, 1
    %p48 = scmp.ne.s32.totalorder %s43, %s45
    %p49 = scmp.eq.s32.totalorder %s9, 0
    %p50 = por %p48, %p49
    %p51 = scmp.ne.s32.totalorder %s43, %s45
    %p52 = scmp.eq.s32.totalorder %s14, 1
    %p53 = por %p51, %p52
    %p54 = scmp.ne.s32.totalorder %s45, %s46
    %p55 = scmp.eq.s32.totalorder %s14, 0
    %p56 = por %p54, %p55
    %p57 = scmp.ne.s32.totalorder %s45, %s46
    %p58 = scmp.eq.s32.totalorder %s15, 1
    %p59 = por %p57, %p58
    %p61 = scmp.ne.s32.totalorder %s46, %s60
    %p62 = scmp.eq.s32.totalorder %s15, 0
    %p63 = por %p61, %p62
    %s65 = sadd.s32 %s64, 1
    %p68 = scmp.eq.s32.totalorder %s9, 1
    %p69 = scmp.ne.s32.totalorder %s64, %s66
    %p70 = scmp.eq.s32.totalorder %s9, 0
    %p71 = por %p69, %p70
    %p72 = scmp.ne.s32.totalorder %s64, %s66
    %p73 = scmp.eq.s32.totalorder %s14, 1
    %p74 = por %p72, %p73
    %p75 = scmp.ne.s32.totalorder %s66, %s67
    %p76 = scmp.eq.s32.totalorder %s14, 0
    %p77 = por %p75, %p76
    %p78 = scmp.ne.s32.totalorder %s66, %s67
    %p79 = scmp.eq.s32.totalorder %s15, 1
    %p80 = por %p78, %p79
    %p82 = scmp.ne.s32.totalorder %s67, %s81
    %p83 = scmp.eq.s32.totalorder %s15, 0
    %p84 = por %p82, %p83
    %s85 = ssub.s32 %s9, %s16
    %p86 = scmp.eq.s32.totalorder %s85, 0
    %s88 = sadd.s32 %s87, 1
    %s89 = scalar_select %p86, %s87, %s88
    %p92 = pneg %p86
    %p93 = scmp.eq.s32.totalorder %s9, 1
    %p94 = por %p92, %p93
    %p95 = scmp.ne.s32.totalorder %s87, %s90
    %p96 = scmp.eq.s32.totalorder %s9, 0
    %p97 = por %p95, %p96
    %p98 = scmp.ne.s32.totalorder %s87, %s90
    %p99 = scmp.eq.s32.totalorder %s14, 1
    %p100 = por %p98, %p99
    %p101 = scmp.ne.s32.totalorder %s90, %s91
    %p102 = scmp.eq.s32.totalorder %s14, 0
    %p103 = por %p101, %p102
    %p104 = scmp.ne.s32.totalorder %s90, %s91
    %p105 = scmp.eq.s32.totalorder %s15, 1
    %p106 = por %p104, %p105
    %p108 = scmp.ne.s32.totalorder %s91, %s107
    %p109 = scmp.eq.s32.totalorder %s15, 0
    %p110 = por %p108, %p109
    %p111 = scmp.le.s32.totalorder 1, %s9
    %p112 = scmp.lt.s32.totalorder %s9, 3
    %p113 = pnand %p111, %p112
    %p114 = pneg %p113
    // Predicated region
    $region9: #{tpu_custom_call.1} parent=5 // pred_check
      _
    $region10: #{tpu_custom_call.1} parent=5 // pred_check_branch
      %116 = sbr.rel (%p113) target = $region12
    $region11: #{tpu_custom_call.1} parent=5 // pred_region
      %s117 = ssub.s32 %s9, 1
      // Predicated region
      $region13: #{tpu_custom_call.1} parent=11 // pred_check
        %p118 = pneg %p56
      $region14: #{tpu_custom_call.1} parent=11 // pred_check_branch
        %120 = sbr.rel (%p118) target = $region16
      $region15: #{tpu_custom_call.1} parent=11 // pred_region
        _
      $region16: #{tpu_custom_call.1} parent=11 // pred_fallthru
        _
      // Predicated region
      $region17: #{tpu_custom_call.1} parent=11 // pred_check
        %p121 = pneg %p77
      $region18: #{tpu_custom_call.1} parent=11 // pred_check_branch
        %123 = sbr.rel (%p121) target = $region20
      $region19: #{tpu_custom_call.1} parent=11 // pred_region
        _
      $region20: #{tpu_custom_call.1} parent=11 // pred_fallthru
        _
    $region12: #{tpu_custom_call.1} parent=5 // pred_fallthru
      _
    %p124 = scmp.lt.s32.totalorder %s9, 2
    // Predicated region
    $region21: #{tpu_custom_call.1} parent=5 // pred_check
      %p125 = pneg %p124
    $region22: #{tpu_custom_call.1} parent=5 // pred_check_branch
      %127 = sbr.rel (%p125) target = $region24
    $region23: #{tpu_custom_call.1} parent=5 // pred_region
      // Predicated region
      $region25: #{tpu_custom_call.1} parent=23 // pred_check
        %p128 = pneg %p29
      $region26: #{tpu_custom_call.1} parent=23 // pred_check_branch
        %130 = sbr.rel (%p128) target = $region28
      $region27: #{tpu_custom_call.1} parent=23 // pred_region
        %p131 = scmp.lt.s32.totalorder %s9, 1
        %s132 = scalar_select %p131, %s9, 1
        %s133 = smul.addr %s132, 28
        %s134 = smul.addr %s133, 8
        %s135 = scalar_lea.vmem %s0, %s134
      $region28: #{tpu_custom_call.1} parent=23 // pred_fallthru
        _
    $region24: #{tpu_custom_call.1} parent=5 // pred_fallthru
      _
    %p136 = scmp.le.s32.totalorder 1, %s9
    %p137 = scmp.lt.s32.totalorder %s9, 3
    %p138 = pnand %p136, %p137
    %p139 = pneg %p138
    // Predicated region
    $region29: #{tpu_custom_call.1} parent=5 // pred_check
      _
    $region30: #{tpu_custom_call.1} parent=5 // pred_check_branch
      %141 = sbr.rel (%p138) target = $region32
    $region31: #{tpu_custom_call.1} parent=5 // pred_region
      %s142 = ssub.s32 %s9, 1
      %p143 = scmp.lt.s32.totalorder %s14, 1
      %s144 = scalar_select %p143, %s14, 1
      %s145 = smul.addr %s144, 28
      %s146 = smul.addr %s145, 8
      %s147 = scalar_lea.vmem %s0, %s146
      %p148 = pneg %p35
      %p149 = pneg %p32
      %p150 = pneg %p56
      %p151 = pneg %p53
      %p152 = pneg %p77
      %p153 = pneg %p74
      %p154 = pneg %p103
      %p155 = pneg %p100
      %p156 = scmp.lt.s32.totalorder %s14, 1
      %s157 = scalar_select %p156, %s14, 1
      %s158 = smul.addr %s157, 28
      %s159 = smul.addr %s158, 8
      %s160 = scalar_lea.vmem %s3, %s159
      %p161 = scmp.lt.s32.totalorder %s14, 1
      %s162 = scalar_select %p161, %s14, 1
      %s163 = smul.addr %s162, 28
      %s164 = smul.addr %s163, 8
      %s165 = scalar_lea.vmem %s0, %s164
      %p166 = scmp.lt.s32.totalorder %s14, 1
      %s167 = scalar_select %p166, %s14, 1
      %s168 = smul.addr %s167, 28
      %s169 = smul.addr %s168, 8
      %s170 = scalar_lea.vmem %s3, %s169
      %v171 = vld [vmem:[%s2] sm:$0xf]
      %v172 = vld [vmem:[%s165] sm:$0xff]
      %v173 = vld [vmem:[%s165 + $0x8] sm:$0xff]
      %v174 = vld [vmem:[%s165 + $0x10] sm:$0xff]
      %v175 = vld [vmem:[%s165 + $0x18] sm:$0xff]
      %v176 = vld [vmem:[%s165 + $0x20] sm:$0xff]
      %v177 = vld [vmem:[%s165 + $0x28] sm:$0xff]
      %v178 = vld [vmem:[%s165 + $0x30] sm:$0x1]
      %v179 = vld [vmem:[%s1] sm:$0xff]
      %v180 = vld [vmem:[%s1 + $0x8] sm:$0xff]
      %v181 = vld [vmem:[%s1 + $0x10] sm:$0xff]
      %v182 = vld [vmem:[%s1 + $0x18] sm:$0xff]
      %v183 = vld [vmem:[%s1 + $0x20] sm:$0xff]
      %v184 = vld [vmem:[%s1 + $0x28] sm:$0xff]
      %v185 = vld [vmem:[%s1 + $0x30] sm:$0xff]
      %v186 = vld [vmem:[%s1 + $0x38] sm:$0xff]
      %v187 = vld [vmem:[%s1 + $0x40] sm:$0xff]
      %v188 = vld [vmem:[%s1 + $0x48] sm:$0xff]
      %v189 = vld [vmem:[%s1 + $0x50] sm:$0xff]
      %v190 = vld [vmem:[%s1 + $0x58] sm:$0xff]
      %v191 = vld [vmem:[%s1 + $0x60] sm:$0x7]
      %v192 = vld [vmem:[%s1 + $0x68] sm:$0x7]
      %v193 = vld [vmem:[%s1 + $0x70] sm:$0x7]
      %v194 = vld [vmem:[%s1 + $0x78] sm:$0x7]
      %v196 = vlaneseq
      %v197 = vshrl.u32 %v196, 7
      %v198 = vsub.s32 0, %v197
      %v199 = vrot.slane %v171, %v198
      %v200 = vlaneseq
      %v201 = vshrl.u32 %v200, 7
      %v202 = vsub.s32 1, %v201
      %v203 = vrot.slane %v171, %v202
      %v204 = vlaneseq
      %v205 = vshrl.u32 %v204, 7
      %v206 = vsub.s32 2, %v205
      %v207 = vrot.slane %v171, %v206
      %v208 = vlaneseq
      %v209 = vshrl.u32 %v208, 7
      %v210 = vsub.s32 3, %v209
      %v211 = vrot.slane %v171, %v210
      %vm216 = vcmask 220160
      %v218 = vsel %vm216, %v172, 0
      %v221 = vsel %vm216, %v173, 0
      %v224 = vsel %vm216, %v174, 0
      %v227 = vsel %vm216, %v175, 0
      %v230 = vsel %vm216, %v176, 0
      %v233 = vsel %vm216, %v177, 0
      %v236 = vsel %vm216, %v178, 0
      %vm238 = vcmask 1042432
      %v240 = vsel %vm238, %v191, 0
      %v243 = vsel %vm238, %v192, 0
      %v246 = vsel %vm238, %v193, 0
      %v249 = vsel %vm238, %v194, 0
      %251 = vmatprep.subr.mxu0 %v180
      %252 = vmatpush1.msra.mxu0 %v179
      %253 = vmatprep.subr.mxu0 %v184
      %254 = vmatpush1.msra.mxu0 %v183
      %255 = vmatprep.subr.mxu0 %v188
      %256 = vmatpush1.msra.mxu0 %v187
      %257 = vmatprep.subr.mxu0 %v243
      %258 = vmatpush1.msra.mxu0 %v240
      %259 = vmatprep.subr.mxu0 0.0
      %260 = vmatpush1.msra.mxu0 0.0
      %261 = vmatprep.subr.mxu0 0.0
      %262 = vmatpush1.msra.mxu0 0.0
      %263 = vmatprep.subr.mxu0 0.0
      %264 = vmatpush1.msra.mxu0 0.0
      %265 = vmatprep.subr.mxu0 0.0
      %266 = vmatpush1.msra.mxu0 0.0
      %267 = vmatprep.subr.mxu0 0.0
      %268 = vmatpush1.msra.mxu0 0.0
      %269 = vmatprep.subr.mxu0 0.0
      %270 = vmatpush1.msra.mxu0 0.0
      %271 = vmatprep.subr.mxu0 0.0
      %272 = vmatpush1.msra.mxu0 0.0
      %273 = vmatprep.subr.mxu0 0.0
      %274 = vmatpush1.msra.mxu0 0.0
      %275 = vmatprep.subr.mxu0 0.0
      %276 = vmatpush1.msra.mxu0 0.0
      %277 = vmatprep.subr.mxu0 0.0
      %278 = vmatpush1.msra.mxu0 0.0
      %279 = vmatprep.subr.mxu0 0.0
      %280 = vmatpush1.msra.mxu0 0.0
      %281 = vmatprep.subr.mxu0 0.0
      %282 = vmatpush1.msra.mxu0 0.0
      %283 = vmatprep.subr.mxu0 0.0
      %284 = vmatpush1.msra.mxu0 0.0
      %285 = vmatprep.subr.mxu0 0.0
      %286 = vmatpush1.msra.mxu0 0.0
      %287 = vmatprep.subr.mxu0 0.0
      %288 = vmatpush1.msra.mxu0 0.0
      %289 = vmatprep.subr.mxu0 0.0
      %290 = vmatpush1.msra.mxu0 0.0
      %291 = vmatprep.subr.mxu0 0.0
      %292 = vmatpush1.msra.mxu0 0.0
      %293 = vmatprep.subr.mxu0 0.0
      %294 = vmatpush1.msra.mxu0 0.0
      %295 = vmatprep.subr.mxu0 0.0
      %296 = vmatpush1.msra.mxu0 0.0
      %297 = vmatprep.subr.mxu0 0.0
      %298 = vmatpush1.msra.mxu0 0.0
      %299 = vmatprep.subr.mxu0 0.0
      %300 = vmatpush1.msra.mxu0 0.0
      %301 = vmatprep.subr.mxu0 0.0
      %302 = vmatpush1.msra.mxu0 0.0
      %303 = vmatprep.subr.mxu0 0.0
      %304 = vmatpush1.msra.mxu0 0.0
      %305 = vmatprep.subr.mxu0 0.0
      %306 = vmatpush1.msra.mxu0 0.0
      %307 = vmatprep.subr.mxu0 0.0
      %308 = vmatpush1.msra.mxu0 0.0
      %309 = vmatprep.subr.mxu0 0.0
      %310 = vmatpush1.msra.mxu0 0.0
      %311 = vmatprep.subr.mxu0 0.0
      %312 = vmatpush1.msra.mxu0 0.0
      %313 = vmatprep.subr.mxu0 0.0
      %314 = vmatpush1.msra.mxu0 0.0
      %315 = vmatprep.mubr.f32.mxu0 0.0
      %316 = vmatmul.mubr.f32.gmra.mrb[0].mxu0 %v218
      %v317 = vpop.f32.mrb[0].mxu0
      %v318 = vadd.f32 %v199, %v317
      %v319 = vpop.f32.mrb[0].mxu0
      %v320 = vadd.f32 %v203, %v319
      %321 = vmatprep.mubr.f32.mxu0 0.0
      %322 = vmatmul.mubr.f32.gmra.mrb[0].mxu0 %v221
      %v323 = vpop.f32.mrb[0].mxu0
      %v324 = vadd.f32 %v199, %v323
      %v325 = vpop.f32.mrb[0].mxu0
      %v326 = vadd.f32 %v203, %v325
      %327 = vmatprep.mubr.f32.mxu0 0.0
      %328 = vmatmul.mubr.f32.gmra.mrb[0].mxu0 %v224
      %v329 = vpop.f32.mrb[0].mxu0
      %v330 = vadd.f32 %v199, %v329
      %v331 = vpop.f32.mrb[0].mxu0
      %v332 = vadd.f32 %v203, %v331
      %333 = vmatprep.mubr.f32.mxu0 0.0
      %334 = vmatmul.mubr.f32.gmra.mrb[0].mxu0 %v227
      %v335 = vpop.f32.mrb[0].mxu0
      %v336 = vadd.f32 %v199, %v335
      %v337 = vpop.f32.mrb[0].mxu0
      %v338 = vadd.f32 %v203, %v337
      %339 = vmatprep.mubr.f32.mxu0 0.0
      %340 = vmatmul.mubr.f32.gmra.mrb[0].mxu0 %v230
      %v341 = vpop.f32.mrb[0].mxu0
      %v342 = vadd.f32 %v199, %v341
      %v343 = vpop.f32.mrb[0].mxu0
      %v344 = vadd.f32 %v203, %v343
      %345 = vmatprep.mubr.f32.mxu0 0.0
      %346 = vmatmul.mubr.f32.gmra.mrb[0].mxu0 %v233
      %v347 = vpop.f32.mrb[0].mxu0
      %v348 = vadd.f32 %v199, %v347
      %v349 = vpop.f32.mrb[0].mxu0
      %v350 = vadd.f32 %v203, %v349
      %351 = vmatprep.mubr.f32.mxu0 0.0
      %352 = vmatmul.mubr.f32.gmra.mrb[0].mxu0 %v236
      %v353 = vpop.f32.mrb[0].mxu0
      %v354 = vadd.f32 %v199, %v353
      %v355 = vpop.f32.mrb[0].mxu0
      %v356 = vadd.f32 %v203, %v355
      %357 = vdwg.mxu0
      %358 = vmatprep.subr.mxu0 %v182
      %359 = vmatpush1.msra.mxu0 %v181
      %360 = vmatprep.subr.mxu0 %v186
      %361 = vmatpush1.msra.mxu0 %v185
      %362 = vmatprep.subr.mxu0 %v190
      %363 = vmatpush1.msra.mxu0 %v189
      %364 = vmatprep.subr.mxu0 %v249
      %365 = vmatpush1.msra.mxu0 %v246
      %366 = vmatprep.subr.mxu0 0.0
      %367 = vmatpush1.msra.mxu0 0.0
      %368 = vmatprep.subr.mxu0 0.0
      %369 = vmatpush1.msra.mxu0 0.0
      %370 = vmatprep.subr.mxu0 0.0
      %371 = vmatpush1.msra.mxu0 0.0
      %372 = vmatprep.subr.mxu0 0.0
      %373 = vmatpush1.msra.mxu0 0.0
      %374 = vmatprep.subr.mxu0 0.0
      %375 = vmatpush1.msra.mxu0 0.0
      %376 = vmatprep.subr.mxu0 0.0
      %377 = vmatpush1.msra.mxu0 0.0
      %378 = vmatprep.subr.mxu0 0.0
      %379 = vmatpush1.msra.mxu0 0.0
      %380 = vmatprep.subr.mxu0 0.0
      %381 = vmatpush1.msra.mxu0 0.0
      %382 = vmatprep.subr.mxu0 0.0
      %383 = vmatpush1.msra.mxu0 0.0
      %384 = vmatprep.subr.mxu0 0.0
      %385 = vmatpush1.msra.mxu0 0.0
      %386 = vmatprep.subr.mxu0 0.0
      %387 = vmatpush1.msra.mxu0 0.0
      %388 = vmatprep.subr.mxu0 0.0
      %389 = vmatpush1.msra.mxu0 0.0
      %390 = vmatprep.subr.mxu0 0.0
      %391 = vmatpush1.msra.mxu0 0.0
      %392 = vmatprep.subr.mxu0 0.0
      %393 = vmatpush1.msra.mxu0 0.0
      %394 = vmatprep.subr.mxu0 0.0
      %395 = vmatpush1.msra.mxu0 0.0
      %396 = vmatprep.subr.mxu0 0.0
      %397 = vmatpush1.msra.mxu0 0.0
      %398 = vmatprep.subr.mxu0 0.0
      %399 = vmatpush1.msra.mxu0 0.0
      %400 = vmatprep.subr.mxu0 0.0
      %401 = vmatpush1.msra.mxu0 0.0
      %402 = vmatprep.subr.mxu0 0.0
      %403 = vmatpush1.msra.mxu0 0.0
      %404 = vmatprep.subr.mxu0 0.0
      %405 = vmatpush1.msra.mxu0 0.0
      %406 = vmatprep.subr.mxu0 0.0
      %407 = vmatpush1.msra.mxu0 0.0
      %408 = vmatprep.subr.mxu0 0.0
      %409 = vmatpush1.msra.mxu0 0.0
      %410 = vmatprep.subr.mxu0 0.0
      %411 = vmatpush1.msra.mxu0 0.0
      %412 = vmatprep.subr.mxu0 0.0
      %413 = vmatpush1.msra.mxu0 0.0
      %414 = vmatprep.subr.mxu0 0.0
      %415 = vmatpush1.msra.mxu0 0.0
      %416 = vmatprep.subr.mxu0 0.0
      %417 = vmatpush1.msra.mxu0 0.0
      %418 = vmatprep.subr.mxu0 0.0
      %419 = vmatpush1.msra.mxu0 0.0
      %420 = vmatprep.subr.mxu0 0.0
      %421 = vmatpush1.msra.mxu0 0.0
      %422 = vmatprep.mubr.f32.mxu0 0.0
      %423 = vmatmul.mubr.f32.gmra.mrb[0].mxu0 %v218
      %v424 = vpop.f32.mrb[0].mxu0
      %v425 = vadd.f32 %v207, %v424
      %v426 = vpop.f32.mrb[0].mxu0
      %v427 = vadd.f32 %v211, %v426
      %428 = vmatprep.mubr.f32.mxu0 0.0
      %429 = vmatmul.mubr.f32.gmra.mrb[0].mxu0 %v221
      %v430 = vpop.f32.mrb[0].mxu0
      %v431 = vadd.f32 %v207, %v430
      %v432 = vpop.f32.mrb[0].mxu0
      %v433 = vadd.f32 %v211, %v432
      %434 = vmatprep.mubr.f32.mxu0 0.0
      %435 = vmatmul.mubr.f32.gmra.mrb[0].mxu0 %v224
      %v436 = vpop.f32.mrb[0].mxu0
      %v437 = vadd.f32 %v207, %v436
      %v438 = vpop.f32.mrb[0].mxu0
      %v439 = vadd.f32 %v211, %v438
      %440 = vmatprep.mubr.f32.mxu0 0.0
      %441 = vmatmul.mubr.f32.gmra.mrb[0].mxu0 %v227
      %v442 = vpop.f32.mrb[0].mxu0
      %v443 = vadd.f32 %v207, %v442
      %v444 = vpop.f32.mrb[0].mxu0
      %v445 = vadd.f32 %v211, %v444
      %446 = vmatprep.mubr.f32.mxu0 0.0
      %447 = vmatmul.mubr.f32.gmra.mrb[0].mxu0 %v230
      %v448 = vpop.f32.mrb[0].mxu0
      %v449 = vadd.f32 %v207, %v448
      %v450 = vpop.f32.mrb[0].mxu0
      %v451 = vadd.f32 %v211, %v450
      %452 = vmatprep.mubr.f32.mxu0 0.0
      %453 = vmatmul.mubr.f32.gmra.mrb[0].mxu0 %v233
      %v454 = vpop.f32.mrb[0].mxu0
      %v455 = vadd.f32 %v207, %v454
      %v456 = vpop.f32.mrb[0].mxu0
      %v457 = vadd.f32 %v211, %v456
      %458 = vmatprep.mubr.f32.mxu0 0.0
      %459 = vmatmul.mubr.f32.gmra.mrb[0].mxu0 %v236
      %v460 = vpop.f32.mrb[0].mxu0
      %v461 = vadd.f32 %v207, %v460
      %v462 = vpop.f32.mrb[0].mxu0
      %v463 = vadd.f32 %v211, %v462
      %464 = vdwg.mxu0
      %v465 = vmax.f32 %v318, 0.0
      %v466 = vmax.f32 %v320, 0.0
      %v467 = vmax.f32 %v425, 0.0
      %v468 = vmax.f32 %v427, 0.0
      %v469 = vmax.f32 %v324, 0.0
      %v470 = vmax.f32 %v326, 0.0
      %v471 = vmax.f32 %v431, 0.0
      %v472 = vmax.f32 %v433, 0.0
      %v473 = vmax.f32 %v330, 0.0
      %v474 = vmax.f32 %v332, 0.0
      %v475 = vmax.f32 %v437, 0.0
      %v476 = vmax.f32 %v439, 0.0
      %v477 = vmax.f32 %v336, 0.0
      %v478 = vmax.f32 %v338, 0.0
      %v479 = vmax.f32 %v443, 0.0
      %v480 = vmax.f32 %v445, 0.0
      %v481 = vmax.f32 %v342, 0.0
      %v482 = vmax.f32 %v344, 0.0
      %v483 = vmax.f32 %v449, 0.0
      %v484 = vmax.f32 %v451, 0.0
      %v485 = vmax.f32 %v348, 0.0
      %v486 = vmax.f32 %v350, 0.0
      %v487 = vmax.f32 %v455, 0.0
      %v488 = vmax.f32 %v457, 0.0
      %v489 = vmax.f32 %v354, 0.0
      %v490 = vmax.f32 %v356, 0.0
      %v491 = vmax.f32 %v461, 0.0
      %v492 = vmax.f32 %v463, 0.0
      %s493 = scalar_lea.vmem %s165, 56
      %v494 = vld [vmem:[%s493] sm:$0xff]
      %v495 = vld [vmem:[%s493 + $0x8] sm:$0xff]
      %v496 = vld [vmem:[%s493 + $0x10] sm:$0xff]
      %v497 = vld [vmem:[%s493 + $0x18] sm:$0xff]
      %v498 = vld [vmem:[%s493 + $0x20] sm:$0xff]
      %v499 = vld [vmem:[%s493 + $0x28] sm:$0xff]
      %v500 = vld [vmem:[%s493 + $0x30] sm:$0x1]
      %v502 = vsel %vm216, %v494, 0
      %v505 = vsel %vm216, %v495, 0
      %v508 = vsel %vm216, %v496, 0
      %v511 = vsel %vm216, %v497, 0
      %v514 = vsel %vm216, %v498, 0
      %v517 = vsel %vm216, %v499, 0
      %v520 = vsel %vm216, %v500, 0
      %522 = vmatprep.subr.mxu0 %v180
      %523 = vmatpush1.msra.mxu0 %v179
      %524 = vmatprep.subr.mxu0 %v184
      %525 = vmatpush1.msra.mxu0 %v183
      %526 = vmatprep.subr.mxu0 %v188
      %527 = vmatpush1.msra.mxu0 %v187
      %528 = vmatprep.subr.mxu0 %v243
      %529 = vmatpush1.msra.mxu0 %v240
      %530 = vmatprep.subr.mxu0 0.0
      %531 = vmatpush1.msra.mxu0 0.0
      %532 = vmatprep.subr.mxu0 0.0
      %533 = vmatpush1.msra.mxu0 0.0
      %534 = vmatprep.subr.mxu0 0.0
      %535 = vmatpush1.msra.mxu0 0.0
      %536 = vmatprep.subr.mxu0 0.0
      %537 = vmatpush1.msra.mxu0 0.0
      %538 = vmatprep.subr.mxu0 0.0
      %539 = vmatpush1.msra.mxu0 0.0
      %540 = vmatprep.subr.mxu0 0.0
      %541 = vmatpush1.msra.mxu0 0.0
      %542 = vmatprep.subr.mxu0 0.0
      %543 = vmatpush1.msra.mxu0 0.0
      %544 = vmatprep.subr.mxu0 0.0
      %545 = vmatpush1.msra.mxu0 0.0
      %546 = vmatprep.subr.mxu0 0.0
      %547 = vmatpush1.msra.mxu0 0.0
      %548 = vmatprep.subr.mxu0 0.0
      %549 = vmatpush1.msra.mxu0 0.0
      %550 = vmatprep.subr.mxu0 0.0
      %551 = vmatpush1.msra.mxu0 0.0
      %552 = vmatprep.subr.mxu0 0.0
      %553 = vmatpush1.msra.mxu0 0.0
      %554 = vmatprep.subr.mxu0 0.0
      %555 = vmatpush1.msra.mxu0 0.0
      %556 = vmatprep.subr.mxu0 0.0
      %557 = vmatpush1.msra.mxu0 0.0
      %558 = vmatprep.subr.mxu0 0.0
      %559 = vmatpush1.msra.mxu0 0.0
      %560 = vmatprep.subr.mxu0 0.0
      %561 = vmatpush1.msra.mxu0 0.0
      %562 = vmatprep.subr.mxu0 0.0
      %563 = vmatpush1.msra.mxu0 0.0
      %564 = vmatprep.subr.mxu0 0.0
      %565 = vmatpush1.msra.mxu0 0.0
      %566 = vmatprep.subr.mxu0 0.0
      %567 = vmatpush1.msra.mxu0 0.0
      %568 = vmatprep.subr.mxu0 0.0
      %569 = vmatpush1.msra.mxu0 0.0
      %570 = vmatprep.subr.mxu0 0.0
      %571 = vmatpush1.msra.mxu0 0.0
      %572 = vmatprep.subr.mxu0 0.0
      %573 = vmatpush1.msra.mxu0 0.0
      %574 = vmatprep.subr.mxu0 0.0
      %575 = vmatpush1.msra.mxu0 0.0
      %576 = vmatprep.subr.mxu0 0.0
      %577 = vmatpush1.msra.mxu0 0.0
      %578 = vmatprep.subr.mxu0 0.0
      %579 = vmatpush1.msra.mxu0 0.0
      %580 = vmatprep.subr.mxu0 0.0
      %581 = vmatpush1.msra.mxu0 0.0
      %582 = vmatprep.subr.mxu0 0.0
      %583 = vmatpush1.msra.mxu0 0.0
      %584 = vmatprep.subr.mxu0 0.0
      %585 = vmatpush1.msra.mxu0 0.0
      %586 = vmatprep.mubr.f32.mxu0 0.0
      %587 = vmatmul.mubr.f32.gmra.mrb[0].mxu0 %v502
      %v588 = vpop.f32.mrb[0].mxu0
      %v589 = vadd.f32 %v199, %v588
      %v590 = vpop.f32.mrb[0].mxu0
      %v591 = vadd.f32 %v203, %v590
      %592 = vmatprep.mubr.f32.mxu0 0.0
      %593 = vmatmul.mubr.f32.gmra.mrb[0].mxu0 %v505
      %v594 = vpop.f32.mrb[0].mxu0
      %v595 = vadd.f32 %v199, %v594
      %v596 = vpop.f32.mrb[0].mxu0
      %v597 = vadd.f32 %v203, %v596
      %598 = vmatprep.mubr.f32.mxu0 0.0
      %599 = vmatmul.mubr.f32.gmra.mrb[0].mxu0 %v508
      %v600 = vpop.f32.mrb[0].mxu0
      %v601 = vadd.f32 %v199, %v600
      %v602 = vpop.f32.mrb[0].mxu0
      %v603 = vadd.f32 %v203, %v602
      %604 = vmatprep.mubr.f32.mxu0 0.0
      %605 = vmatmul.mubr.f32.gmra.mrb[0].mxu0 %v511
      %v606 = vpop.f32.mrb[0].mxu0
      %v607 = vadd.f32 %v199, %v606
      %v608 = vpop.f32.mrb[0].mxu0
      %v609 = vadd.f32 %v203, %v608
      %610 = vmatprep.mubr.f32.mxu0 0.0
      %611 = vmatmul.mubr.f32.gmra.mrb[0].mxu0 %v514
      %v612 = vpop.f32.mrb[0].mxu0
      %v613 = vadd.f32 %v199, %v612
      %v614 = vpop.f32.mrb[0].mxu0
      %v615 = vadd.f32 %v203, %v614
      %616 = vmatprep.mubr.f32.mxu0 0.0
      %617 = vmatmul.mubr.f32.gmra.mrb[0].mxu0 %v517
      %v618 = vpop.f32.mrb[0].mxu0
      %v619 = vadd.f32 %v199, %v618
      %v620 = vpop.f32.mrb[0].mxu0
      %v621 = vadd.f32 %v203, %v620
      %622 = vmatprep.mubr.f32.mxu0 0.0
      %623 = vmatmul.mubr.f32.gmra.mrb[0].mxu0 %v520
      %v624 = vpop.f32.mrb[0].mxu0
      %v625 = vadd.f32 %v199, %v624
      %v626 = vpop.f32.mrb[0].mxu0
      %v627 = vadd.f32 %v203, %v626
      %628 = vdwg.mxu0
      %629 = vmatprep.subr.mxu0 %v182
      %630 = vmatpush1.msra.mxu0 %v181
      %631 = vmatprep.subr.mxu0 %v186
      %632 = vmatpush1.msra.mxu0 %v185
      %633 = vmatprep.subr.mxu0 %v190
      %634 = vmatpush1.msra.mxu0 %v189
      %635 = vmatprep.subr.mxu0 %v249
      %636 = vmatpush1.msra.mxu0 %v246
      %637 = vmatprep.subr.mxu0 0.0
      %638 = vmatpush1.msra.mxu0 0.0
      %639 = vmatprep.subr.mxu0 0.0
      %640 = vmatpush1.msra.mxu0 0.0
      %641 = vmatprep.subr.mxu0 0.0
      %642 = vmatpush1.msra.mxu0 0.0
      %643 = vmatprep.subr.mxu0 0.0
      %644 = vmatpush1.msra.mxu0 0.0
      %645 = vmatprep.subr.mxu0 0.0
      %646 = vmatpush1.msra.mxu0 0.0
      %647 = vmatprep.subr.mxu0 0.0
      %648 = vmatpush1.msra.mxu0 0.0
      %649 = vmatprep.subr.mxu0 0.0
      %650 = vmatpush1.msra.mxu0 0.0
      %651 = vmatprep.subr.mxu0 0.0
      %652 = vmatpush1.msra.mxu0 0.0
      %653 = vmatprep.subr.mxu0 0.0
      %654 = vmatpush1.msra.mxu0 0.0
      %655 = vmatprep.subr.mxu0 0.0
      %656 = vmatpush1.msra.mxu0 0.0
      %657 = vmatprep.subr.mxu0 0.0
      %658 = vmatpush1.msra.mxu0 0.0
      %659 = vmatprep.subr.mxu0 0.0
      %660 = vmatpush1.msra.mxu0 0.0
      %661 = vmatprep.subr.mxu0 0.0
      %662 = vmatpush1.msra.mxu0 0.0
      %663 = vmatprep.subr.mxu0 0.0
      %664 = vmatpush1.msra.mxu0 0.0
      %665 = vmatprep.subr.mxu0 0.0
      %666 = vmatpush1.msra.mxu0 0.0
      %667 = vmatprep.subr.mxu0 0.0
      %668 = vmatpush1.msra.mxu0 0.0
      %669 = vmatprep.subr.mxu0 0.0
      %670 = vmatpush1.msra.mxu0 0.0
      %671 = vmatprep.subr.mxu0 0.0
      %672 = vmatpush1.msra.mxu0 0.0
      %673 = vmatprep.subr.mxu0 0.0
      %674 = vmatpush1.msra.mxu0 0.0
      %675 = vmatprep.subr.mxu0 0.0
      %676 = vmatpush1.msra.mxu0 0.0
      %677 = vmatprep.subr.mxu0 0.0
      %678 = vmatpush1.msra.mxu0 0.0
      %679 = vmatprep.subr.mxu0 0.0
      %680 = vmatpush1.msra.mxu0 0.0
      %681 = vmatprep.subr.mxu0 0.0
      %682 = vmatpush1.msra.mxu0 0.0
      %683 = vmatprep.subr.mxu0 0.0
      %684 = vmatpush1.msra.mxu0 0.0
      %685 = vmatprep.subr.mxu0 0.0
      %686 = vmatpush1.msra.mxu0 0.0
      %687 = vmatprep.subr.mxu0 0.0
      %688 = vmatpush1.msra.mxu0 0.0
      %689 = vmatprep.subr.mxu0 0.0
      %690 = vmatpush1.msra.mxu0 0.0
      %691 = vmatprep.subr.mxu0 0.0
      %692 = vmatpush1.msra.mxu0 0.0
      %693 = vmatprep.mubr.f32.mxu0 0.0
      %694 = vmatmul.mubr.f32.gmra.mrb[0].mxu0 %v502
      %v695 = vpop.f32.mrb[0].mxu0
      %v696 = vadd.f32 %v207, %v695
      %v697 = vpop.f32.mrb[0].mxu0
      %v698 = vadd.f32 %v211, %v697
      %699 = vmatprep.mubr.f32.mxu0 0.0
      %700 = vmatmul.mubr.f32.gmra.mrb[0].mxu0 %v505
      %v701 = vpop.f32.mrb[0].mxu0
      %v702 = vadd.f32 %v207, %v701
      %v703 = vpop.f32.mrb[0].mxu0
      %v704 = vadd.f32 %v211, %v703
      %705 = vmatprep.mubr.f32.mxu0 0.0
      %706 = vmatmul.mubr.f32.gmra.mrb[0].mxu0 %v508
      %v707 = vpop.f32.mrb[0].mxu0
      %v708 = vadd.f32 %v207, %v707
      %v709 = vpop.f32.mrb[0].mxu0
      %v710 = vadd.f32 %v211, %v709
      %711 = vmatprep.mubr.f32.mxu0 0.0
      %712 = vmatmul.mubr.f32.gmra.mrb[0].mxu0 %v511
      %v713 = vpop.f32.mrb[0].mxu0
      %v714 = vadd.f32 %v207, %v713
      %v715 = vpop.f32.mrb[0].mxu0
      %v716 = vadd.f32 %v211, %v715
      %717 = vmatprep.mubr.f32.mxu0 0.0
      %718 = vmatmul.mubr.f32.gmra.mrb[0].mxu0 %v514
      %v719 = vpop.f32.mrb[0].mxu0
      %v720 = vadd.f32 %v207, %v719
      %v721 = vpop.f32.mrb[0].mxu0
      %v722 = vadd.f32 %v211, %v721
      %723 = vmatprep.mubr.f32.mxu0 0.0
      %724 = vmatmul.mubr.f32.gmra.mrb[0].mxu0 %v517
      %v725 = vpop.f32.mrb[0].mxu0
      %v726 = vadd.f32 %v207, %v725
      %v727 = vpop.f32.mrb[0].mxu0
      %v728 = vadd.f32 %v211, %v727
      %729 = vmatprep.mubr.f32.mxu0 0.0
      %730 = vmatmul.mubr.f32.gmra.mrb[0].mxu0 %v520
      %v731 = vpop.f32.mrb[0].mxu0
      %v732 = vadd.f32 %v207, %v731
      %v733 = vpop.f32.mrb[0].mxu0
      %v734 = vadd.f32 %v211, %v733
      %735 = vdwg.mxu0
      %v736 = vmax.f32 %v589, 0.0
      %v737 = vmax.f32 %v591, 0.0
      %v738 = vmax.f32 %v696, 0.0
      %v739 = vmax.f32 %v698, 0.0
      %v740 = vmax.f32 %v595, 0.0
      %v741 = vmax.f32 %v597, 0.0
      %v742 = vmax.f32 %v702, 0.0
      %v743 = vmax.f32 %v704, 0.0
      %v744 = vmax.f32 %v601, 0.0
      %v745 = vmax.f32 %v603, 0.0
      %v746 = vmax.f32 %v708, 0.0
      %v747 = vmax.f32 %v710, 0.0
      %v748 = vmax.f32 %v607, 0.0
      %v749 = vmax.f32 %v609, 0.0
      %v750 = vmax.f32 %v714, 0.0
      %v751 = vmax.f32 %v716, 0.0
      %v752 = vmax.f32 %v613, 0.0
      %v753 = vmax.f32 %v615, 0.0
      %v754 = vmax.f32 %v720, 0.0
      %v755 = vmax.f32 %v722, 0.0
      %v756 = vmax.f32 %v619, 0.0
      %v757 = vmax.f32 %v621, 0.0
      %v758 = vmax.f32 %v726, 0.0
      %v759 = vmax.f32 %v728, 0.0
      %v760 = vmax.f32 %v625, 0.0
      %v761 = vmax.f32 %v627, 0.0
      %v762 = vmax.f32 %v732, 0.0
      %v763 = vmax.f32 %v734, 0.0
      %v764 = vmax.f32 %v465, %v736
      %v765 = vmax.f32 %v466, %v737
      %v766 = vmax.f32 %v467, %v738
      %v767 = vmax.f32 %v468, %v739
      %v768 = vmax.f32 %v469, %v740
      %v769 = vmax.f32 %v470, %v741
      %v770 = vmax.f32 %v471, %v742
      %v771 = vmax.f32 %v472, %v743
      %v772 = vmax.f32 %v473, %v744
      %v773 = vmax.f32 %v474, %v745
      %v774 = vmax.f32 %v475, %v746
      %v775 = vmax.f32 %v476, %v747
      %v776 = vmax.f32 %v477, %v748
      %v777 = vmax.f32 %v478, %v749
      %v778 = vmax.f32 %v479, %v750
      %v779 = vmax.f32 %v480, %v751
      %v780 = vmax.f32 %v481, %v752
      %v781 = vmax.f32 %v482, %v753
      %v782 = vmax.f32 %v483, %v754
      %v783 = vmax.f32 %v484, %v755
      %v784 = vmax.f32 %v485, %v756
      %v785 = vmax.f32 %v486, %v757
      %v786 = vmax.f32 %v487, %v758
      %v787 = vmax.f32 %v488, %v759
      %v788 = vmax.f32 %v489, %v760
      %v789 = vmax.f32 %v490, %v761
      %v790 = vmax.f32 %v491, %v762
      %v791 = vmax.f32 %v492, %v763
      %s792 = scalar_lea.vmem %s165, 112
      %v793 = vld [vmem:[%s792] sm:$0xff]
      %v794 = vld [vmem:[%s792 + $0x8] sm:$0xff]
      %v795 = vld [vmem:[%s792 + $0x10] sm:$0xff]
      %v796 = vld [vmem:[%s792 + $0x18] sm:$0xff]
      %v797 = vld [vmem:[%s792 + $0x20] sm:$0xff]
      %v798 = vld [vmem:[%s792 + $0x28] sm:$0xff]
      %v799 = vld [vmem:[%s792 + $0x30] sm:$0x1]
      %v801 = vsel %vm216, %v793, 0
      %v804 = vsel %vm216, %v794, 0
      %v807 = vsel %vm216, %v795, 0
      %v810 = vsel %vm216, %v796, 0
      %v813 = vsel %vm216, %v797, 0
      %v816 = vsel %vm216, %v798, 0
      %v819 = vsel %vm216, %v799, 0
      %821 = vmatprep.subr.mxu0 %v180
      %822 = vmatpush1.msra.mxu0 %v179
      %823 = vmatprep.subr.mxu0 %v184
      %824 = vmatpush1.msra.mxu0 %v183
      %825 = vmatprep.subr.mxu0 %v188
      %826 = vmatpush1.msra.mxu0 %v187
      %827 = vmatprep.subr.mxu0 %v243
      %828 = vmatpush1.msra.mxu0 %v240
      %829 = vmatprep.subr.mxu0 0.0
      %830 = vmatpush1.msra.mxu0 0.0
      %831 = vmatprep.subr.mxu0 0.0
      %832 = vmatpush1.msra.mxu0 0.0
      %833 = vmatprep.subr.mxu0 0.0
      %834 = vmatpush1.msra.mxu0 0.0
      %835 = vmatprep.subr.mxu0 0.0
      %836 = vmatpush1.msra.mxu0 0.0
      %837 = vmatprep.subr.mxu0 0.0
      %838 = vmatpush1.msra.mxu0 0.0
      %839 = vmatprep.subr.mxu0 0.0
      %840 = vmatpush1.msra.mxu0 0.0
      %841 = vmatprep.subr.mxu0 0.0
      %842 = vmatpush1.msra.mxu0 0.0
      %843 = vmatprep.subr.mxu0 0.0
      %844 = vmatpush1.msra.mxu0 0.0
      %845 = vmatprep.subr.mxu0 0.0
      %846 = vmatpush1.msra.mxu0 0.0
      %847 = vmatprep.subr.mxu0 0.0
      %848 = vmatpush1.msra.mxu0 0.0
      %849 = vmatprep.subr.mxu0 0.0
      %850 = vmatpush1.msra.mxu0 0.0
      %851 = vmatprep.subr.mxu0 0.0
      %852 = vmatpush1.msra.mxu0 0.0
      %853 = vmatprep.subr.mxu0 0.0
      %854 = vmatpush1.msra.mxu0 0.0
      %855 = vmatprep.subr.mxu0 0.0
      %856 = vmatpush1.msra.mxu0 0.0
      %857 = vmatprep.subr.mxu0 0.0
      %858 = vmatpush1.msra.mxu0 0.0
      %859 = vmatprep.subr.mxu0 0.0
      %860 = vmatpush1.msra.mxu0 0.0
      %861 = vmatprep.subr.mxu0 0.0
      %862 = vmatpush1.msra.mxu0 0.0
      %863 = vmatprep.subr.mxu0 0.0
      %864 = vmatpush1.msra.mxu0 0.0
      %865 = vmatprep.subr.mxu0 0.0
      %866 = vmatpush1.msra.mxu0 0.0
      %867 = vmatprep.subr.mxu0 0.0
      %868 = vmatpush1.msra.mxu0 0.0
      %869 = vmatprep.subr.mxu0 0.0
      %870 = vmatpush1.msra.mxu0 0.0
      %871 = vmatprep.subr.mxu0 0.0
      %872 = vmatpush1.msra.mxu0 0.0
      %873 = vmatprep.subr.mxu0 0.0
      %874 = vmatpush1.msra.mxu0 0.0
      %875 = vmatprep.subr.mxu0 0.0
      %876 = vmatpush1.msra.mxu0 0.0
      %877 = vmatprep.subr.mxu0 0.0
      %878 = vmatpush1.msra.mxu0 0.0
      %879 = vmatprep.subr.mxu0 0.0
      %880 = vmatpush1.msra.mxu0 0.0
      %881 = vmatprep.subr.mxu0 0.0
      %882 = vmatpush1.msra.mxu0 0.0
      %883 = vmatprep.subr.mxu0 0.0
      %884 = vmatpush1.msra.mxu0 0.0
      %885 = vmatprep.mubr.f32.mxu0 0.0
      %886 = vmatmul.mubr.f32.gmra.mrb[0].mxu0 %v801
      %v887 = vpop.f32.mrb[0].mxu0
      %v888 = vadd.f32 %v199, %v887
      %v889 = vpop.f32.mrb[0].mxu0
      %v890 = vadd.f32 %v203, %v889
      %891 = vmatprep.mubr.f32.mxu0 0.0
      %892 = vmatmul.mubr.f32.gmra.mrb[0].mxu0 %v804
      %v893 = vpop.f32.mrb[0].mxu0
      %v894 = vadd.f32 %v199, %v893
      %v895 = vpop.f32.mrb[0].mxu0
      %v896 = vadd.f32 %v203, %v895
      %897 = vmatprep.mubr.f32.mxu0 0.0
      %898 = vmatmul.mubr.f32.gmra.mrb[0].mxu0 %v807
      %v899 = vpop.f32.mrb[0].mxu0
      %v900 = vadd.f32 %v199, %v899
      %v901 = vpop.f32.mrb[0].mxu0
      %v902 = vadd.f32 %v203, %v901
      %903 = vmatprep.mubr.f32.mxu0 0.0
      %904 = vmatmul.mubr.f32.gmra.mrb[0].mxu0 %v810
      %v905 = vpop.f32.mrb[0].mxu0
      %v906 = vadd.f32 %v199, %v905
      %v907 = vpop.f32.mrb[0].mxu0
      %v908 = vadd.f32 %v203, %v907
      %909 = vmatprep.mubr.f32.mxu0 0.0
      %910 = vmatmul.mubr.f32.gmra.mrb[0].mxu0 %v813
      %v911 = vpop.f32.mrb[0].mxu0
      %v912 = vadd.f32 %v199, %v911
      %v913 = vpop.f32.mrb[0].mxu0
      %v914 = vadd.f32 %v203, %v913
      %915 = vmatprep.mubr.f32.mxu0 0.0
      %916 = vmatmul.mubr.f32.gmra.mrb[0].mxu0 %v816
      %v917 = vpop.f32.mrb[0].mxu0
      %v918 = vadd.f32 %v199, %v917
      %v919 = vpop.f32.mrb[0].mxu0
      %v920 = vadd.f32 %v203, %v919
      %921 = vmatprep.mubr.f32.mxu0 0.0
      %922 = vmatmul.mubr.f32.gmra.mrb[0].mxu0 %v819
      %v923 = vpop.f32.mrb[0].mxu0
      %v924 = vadd.f32 %v199, %v923
      %v925 = vpop.f32.mrb[0].mxu0
      %v926 = vadd.f32 %v203, %v925
      %927 = vdwg.mxu0
      %928 = vmatprep.subr.mxu0 %v182
      %929 = vmatpush1.msra.mxu0 %v181
      %930 = vmatprep.subr.mxu0 %v186
      %931 = vmatpush1.msra.mxu0 %v185
      %932 = vmatprep.subr.mxu0 %v190
      %933 = vmatpush1.msra.mxu0 %v189
      %934 = vmatprep.subr.mxu0 %v249
      %935 = vmatpush1.msra.mxu0 %v246
      %936 = vmatprep.subr.mxu0 0.0
      %937 = vmatpush1.msra.mxu0 0.0
      %938 = vmatprep.subr.mxu0 0.0
      %939 = vmatpush1.msra.mxu0 0.0
      %940 = vmatprep.subr.mxu0 0.0
      %941 = vmatpush1.msra.mxu0 0.0
      %942 = vmatprep.subr.mxu0 0.0
      %943 = vmatpush1.msra.mxu0 0.0
      %944 = vmatprep.subr.mxu0 0.0
      %945 = vmatpush1.msra.mxu0 0.0
      %946 = vmatprep.subr.mxu0 0.0
      %947 = vmatpush1.msra.mxu0 0.0
      %948 = vmatprep.subr.mxu0 0.0
      %949 = vmatpush1.msra.mxu0 0.0
      %950 = vmatprep.subr.mxu0 0.0
      %951 = vmatpush1.msra.mxu0 0.0
      %952 = vmatprep.subr.mxu0 0.0
      %953 = vmatpush1.msra.mxu0 0.0
      %954 = vmatprep.subr.mxu0 0.0
      %955 = vmatpush1.msra.mxu0 0.0
      %956 = vmatprep.subr.mxu0 0.0
      %957 = vmatpush1.msra.mxu0 0.0
      %958 = vmatprep.subr.mxu0 0.0
      %959 = vmatpush1.msra.mxu0 0.0
      %960 = vmatprep.subr.mxu0 0.0
      %961 = vmatpush1.msra.mxu0 0.0
      %962 = vmatprep.subr.mxu0 0.0
      %963 = vmatpush1.msra.mxu0 0.0
      %964 = vmatprep.subr.mxu0 0.0
      %965 = vmatpush1.msra.mxu0 0.0
      %966 = vmatprep.subr.mxu0 0.0
      %967 = vmatpush1.msra.mxu0 0.0
      %968 = vmatprep.subr.mxu0 0.0
      %969 = vmatpush1.msra.mxu0 0.0
      %970 = vmatprep.subr.mxu0 0.0
      %971 = vmatpush1.msra.mxu0 0.0
      %972 = vmatprep.subr.mxu0 0.0
      %973 = vmatpush1.msra.mxu0 0.0
      %974 = vmatprep.subr.mxu0 0.0
      %975 = vmatpush1.msra.mxu0 0.0
      %976 = vmatprep.subr.mxu0 0.0
      %977 = vmatpush1.msra.mxu0 0.0
      %978 = vmatprep.subr.mxu0 0.0
      %979 = vmatpush1.msra.mxu0 0.0
      %980 = vmatprep.subr.mxu0 0.0
      %981 = vmatpush1.msra.mxu0 0.0
      %982 = vmatprep.subr.mxu0 0.0
      %983 = vmatpush1.msra.mxu0 0.0
      %984 = vmatprep.subr.mxu0 0.0
      %985 = vmatpush1.msra.mxu0 0.0
      %986 = vmatprep.subr.mxu0 0.0
      %987 = vmatpush1.msra.mxu0 0.0
      %988 = vmatprep.subr.mxu0 0.0
      %989 = vmatpush1.msra.mxu0 0.0
      %990 = vmatprep.subr.mxu0 0.0
      %991 = vmatpush1.msra.mxu0 0.0
      %992 = vmatprep.mubr.f32.mxu0 0.0
      %993 = vmatmul.mubr.f32.gmra.mrb[0].mxu0 %v801
      %v994 = vpop.f32.mrb[0].mxu0
      %v995 = vadd.f32 %v207, %v994
      %v996 = vpop.f32.mrb[0].mxu0
      %v997 = vadd.f32 %v211, %v996
      %998 = vmatprep.mubr.f32.mxu0 0.0
      %999 = vmatmul.mubr.f32.gmra.mrb[0].mxu0 %v804
      %v1000 = vpop.f32.mrb[0].mxu0
      %v1001 = vadd.f32 %v207, %v1000
      %v1002 = vpop.f32.mrb[0].mxu0
      %v1003 = vadd.f32 %v211, %v1002
      %1004 = vmatprep.mubr.f32.mxu0 0.0
      %1005 = vmatmul.mubr.f32.gmra.mrb[0].mxu0 %v807
      %v1006 = vpop.f32.mrb[0].mxu0
      %v1007 = vadd.f32 %v207, %v1006
      %v1008 = vpop.f32.mrb[0].mxu0
      %v1009 = vadd.f32 %v211, %v1008
      %1010 = vmatprep.mubr.f32.mxu0 0.0
      %1011 = vmatmul.mubr.f32.gmra.mrb[0].mxu0 %v810
      %v1012 = vpop.f32.mrb[0].mxu0
      %v1013 = vadd.f32 %v207, %v1012
      %v1014 = vpop.f32.mrb[0].mxu0
      %v1015 = vadd.f32 %v211, %v1014
      %1016 = vmatprep.mubr.f32.mxu0 0.0
      %1017 = vmatmul.mubr.f32.gmra.mrb[0].mxu0 %v813
      %v1018 = vpop.f32.mrb[0].mxu0
      %v1019 = vadd.f32 %v207, %v1018
      %v1020 = vpop.f32.mrb[0].mxu0
      %v1021 = vadd.f32 %v211, %v1020
      %1022 = vmatprep.mubr.f32.mxu0 0.0
      %1023 = vmatmul.mubr.f32.gmra.mrb[0].mxu0 %v816
      %v1024 = vpop.f32.mrb[0].mxu0
      %v1025 = vadd.f32 %v207, %v1024
      %v1026 = vpop.f32.mrb[0].mxu0
      %v1027 = vadd.f32 %v211, %v1026
      %1028 = vmatprep.mubr.f32.mxu0 0.0
      %1029 = vmatmul.mubr.f32.gmra.mrb[0].mxu0 %v819
      %v1030 = vpop.f32.mrb[0].mxu0
      %v1031 = vadd.f32 %v207, %v1030
      %v1032 = vpop.f32.mrb[0].mxu0
      %v1033 = vadd.f32 %v211, %v1032
      %1034 = vdwg.mxu0
      %v1035 = vmax.f32 %v888, 0.0
      %v1036 = vmax.f32 %v890, 0.0
      %v1037 = vmax.f32 %v995, 0.0
      %v1038 = vmax.f32 %v997, 0.0
      %v1039 = vmax.f32 %v894, 0.0
      %v1040 = vmax.f32 %v896, 0.0
      %v1041 = vmax.f32 %v1001, 0.0
      %v1042 = vmax.f32 %v1003, 0.0
      %v1043 = vmax.f32 %v900, 0.0
      %v1044 = vmax.f32 %v902, 0.0
      %v1045 = vmax.f32 %v1007, 0.0
      %v1046 = vmax.f32 %v1009, 0.0
      %v1047 = vmax.f32 %v906, 0.0
      %v1048 = vmax.f32 %v908, 0.0
      %v1049 = vmax.f32 %v1013, 0.0
      %v1050 = vmax.f32 %v1015, 0.0
      %v1051 = vmax.f32 %v912, 0.0
      %v1052 = vmax.f32 %v914, 0.0
      %v1053 = vmax.f32 %v1019, 0.0
      %v1054 = vmax.f32 %v1021, 0.0
      %v1055 = vmax.f32 %v918, 0.0
      %v1056 = vmax.f32 %v920, 0.0
      %v1057 = vmax.f32 %v1025, 0.0
      %v1058 = vmax.f32 %v1027, 0.0
      %v1059 = vmax.f32 %v924, 0.0
      %v1060 = vmax.f32 %v926, 0.0
      %v1061 = vmax.f32 %v1031, 0.0
      %v1062 = vmax.f32 %v1033, 0.0
      %v1063 = vmax.f32 %v764, %v1035
      %v1064 = vmax.f32 %v765, %v1036
      %v1065 = vmax.f32 %v766, %v1037
      %v1066 = vmax.f32 %v767, %v1038
      %v1067 = vmax.f32 %v768, %v1039
      %v1068 = vmax.f32 %v769, %v1040
      %v1069 = vmax.f32 %v770, %v1041
      %v1070 = vmax.f32 %v771, %v1042
      %v1071 = vmax.f32 %v772, %v1043
      %v1072 = vmax.f32 %v773, %v1044
      %v1073 = vmax.f32 %v774, %v1045
      %v1074 = vmax.f32 %v775, %v1046
      %v1075 = vmax.f32 %v776, %v1047
      %v1076 = vmax.f32 %v777, %v1048
      %v1077 = vmax.f32 %v778, %v1049
      %v1078 = vmax.f32 %v779, %v1050
      %v1079 = vmax.f32 %v780, %v1051
      %v1080 = vmax.f32 %v781, %v1052
      %v1081 = vmax.f32 %v782, %v1053
      %v1082 = vmax.f32 %v783, %v1054
      %v1083 = vmax.f32 %v784, %v1055
      %v1084 = vmax.f32 %v785, %v1056
      %v1085 = vmax.f32 %v786, %v1057
      %v1086 = vmax.f32 %v787, %v1058
      %v1087 = vmax.f32 %v788, %v1059
      %v1088 = vmax.f32 %v789, %v1060
      %v1089 = vmax.f32 %v790, %v1061
      %v1090 = vmax.f32 %v791, %v1062
      %s1091 = scalar_lea.vmem %s165, 168
      %v1092 = vld [vmem:[%s1091] sm:$0xff]
      %v1093 = vld [vmem:[%s1091 + $0x8] sm:$0xff]
      %v1094 = vld [vmem:[%s1091 + $0x10] sm:$0xff]
      %v1095 = vld [vmem:[%s1091 + $0x18] sm:$0xff]
      %v1096 = vld [vmem:[%s1091 + $0x20] sm:$0xff]
      %v1097 = vld [vmem:[%s1091 + $0x28] sm:$0xff]
      %v1098 = vld [vmem:[%s1091 + $0x30] sm:$0x1]
      %v1100 = vsel %vm216, %v1092, 0
      %v1103 = vsel %vm216, %v1093, 0
      %v1106 = vsel %vm216, %v1094, 0
      %v1109 = vsel %vm216, %v1095, 0
      %v1112 = vsel %vm216, %v1096, 0
      %v1115 = vsel %vm216, %v1097, 0
      %v1118 = vsel %vm216, %v1098, 0
      %1120 = vmatprep.subr.mxu0 %v180
      %1121 = vmatpush1.msra.mxu0 %v179
      %1122 = vmatprep.subr.mxu0 %v184
      %1123 = vmatpush1.msra.mxu0 %v183
      %1124 = vmatprep.subr.mxu0 %v188
      %1125 = vmatpush1.msra.mxu0 %v187
      %1126 = vmatprep.subr.mxu0 %v243
      %1127 = vmatpush1.msra.mxu0 %v240
      %1128 = vmatprep.subr.mxu0 0.0
      %1129 = vmatpush1.msra.mxu0 0.0
      %1130 = vmatprep.subr.mxu0 0.0
      %1131 = vmatpush1.msra.mxu0 0.0
      %1132 = vmatprep.subr.mxu0 0.0
      %1133 = vmatpush1.msra.mxu0 0.0
      %1134 = vmatprep.subr.mxu0 0.0
      %1135 = vmatpush1.msra.mxu0 0.0
      %1136 = vmatprep.subr.mxu0 0.0
      %1137 = vmatpush1.msra.mxu0 0.0
      %1138 = vmatprep.subr.mxu0 0.0
      %1139 = vmatpush1.msra.mxu0 0.0
      %1140 = vmatprep.subr.mxu0 0.0
      %1141 = vmatpush1.msra.mxu0 0.0
      %1142 = vmatprep.subr.mxu0 0.0
      %1143 = vmatpush1.msra.mxu0 0.0
      %1144 = vmatprep.subr.mxu0 0.0
      %1145 = vmatpush1.msra.mxu0 0.0
      %1146 = vmatprep.subr.mxu0 0.0
      %1147 = vmatpush1.msra.mxu0 0.0
      %1148 = vmatprep.subr.mxu0 0.0
      %1149 = vmatpush1.msra.mxu0 0.0
      %1150 = vmatprep.subr.mxu0 0.0
      %1151 = vmatpush1.msra.mxu0 0.0
      %1152 = vmatprep.subr.mxu0 0.0
      %1153 = vmatpush1.msra.mxu0 0.0
      %1154 = vmatprep.subr.mxu0 0.0
      %1155 = vmatpush1.msra.mxu0 0.0
      %1156 = vmatprep.subr.mxu0 0.0
      %1157 = vmatpush1.msra.mxu0 0.0
      %1158 = vmatprep.subr.mxu0 0.0
      %1159 = vmatpush1.msra.mxu0 0.0
      %1160 = vmatprep.subr.mxu0 0.0
      %1161 = vmatpush1.msra.mxu0 0.0
      %1162 = vmatprep.subr.mxu0 0.0
      %1163 = vmatpush1.msra.mxu0 0.0
      %1164 = vmatprep.subr.mxu0 0.0
      %1165 = vmatpush1.msra.mxu0 0.0
      %1166 = vmatprep.subr.mxu0 0.0
      %1167 = vmatpush1.msra.mxu0 0.0
      %1168 = vmatprep.subr.mxu0 0.0
      %1169 = vmatpush1.msra.mxu0 0.0
      %1170 = vmatprep.subr.mxu0 0.0
      %1171 = vmatpush1.msra.mxu0 0.0
      %1172 = vmatprep.subr.mxu0 0.0
      %1173 = vmatpush1.msra.mxu0 0.0
      %1174 = vmatprep.subr.mxu0 0.0
      %1175 = vmatpush1.msra.mxu0 0.0
      %1176 = vmatprep.subr.mxu0 0.0
      %1177 = vmatpush1.msra.mxu0 0.0
      %1178 = vmatprep.subr.mxu0 0.0
      %1179 = vmatpush1.msra.mxu0 0.0
      %1180 = vmatprep.subr.mxu0 0.0
      %1181 = vmatpush1.msra.mxu0 0.0
      %1182 = vmatprep.subr.mxu0 0.0
      %1183 = vmatpush1.msra.mxu0 0.0
      %1184 = vmatprep.mubr.f32.mxu0 0.0
      %1185 = vmatmul.mubr.f32.gmra.mrb[0].mxu0 %v1100
      %v1186 = vpop.f32.mrb[0].mxu0
      %v1187 = vadd.f32 %v199, %v1186
      %v1188 = vpop.f32.mrb[0].mxu0
      %v1189 = vadd.f32 %v203, %v1188
      %1190 = vmatprep.mubr.f32.mxu0 0.0
      %1191 = vmatmul.mubr.f32.gmra.mrb[0].mxu0 %v1103
      %v1192 = vpop.f32.mrb[0].mxu0
      %v1193 = vadd.f32 %v199, %v1192
      %v1194 = vpop.f32.mrb[0].mxu0
      %v1195 = vadd.f32 %v203, %v1194
      %1196 = vmatprep.mubr.f32.mxu0 0.0
      %1197 = vmatmul.mubr.f32.gmra.mrb[0].mxu0 %v1106
      %v1198 = vpop.f32.mrb[0].mxu0
      %v1199 = vadd.f32 %v199, %v1198
      %v1200 = vpop.f32.mrb[0].mxu0
      %v1201 = vadd.f32 %v203, %v1200
      %1202 = vmatprep.mubr.f32.mxu0 0.0
      %1203 = vmatmul.mubr.f32.gmra.mrb[0].mxu0 %v1109
      %v1204 = vpop.f32.mrb[0].mxu0
      %v1205 = vadd.f32 %v199, %v1204
      %v1206 = vpop.f32.mrb[0].mxu0
      %v1207 = vadd.f32 %v203, %v1206
      %1208 = vmatprep.mubr.f32.mxu0 0.0
      %1209 = vmatmul.mubr.f32.gmra.mrb[0].mxu0 %v1112
      %v1210 = vpop.f32.mrb[0].mxu0
      %v1211 = vadd.f32 %v199, %v1210
      %v1212 = vpop.f32.mrb[0].mxu0
      %v1213 = vadd.f32 %v203, %v1212
      %1214 = vmatprep.mubr.f32.mxu0 0.0
      %1215 = vmatmul.mubr.f32.gmra.mrb[0].mxu0 %v1115
      %v1216 = vpop.f32.mrb[0].mxu0
      %v1217 = vadd.f32 %v199, %v1216
      %v1218 = vpop.f32.mrb[0].mxu0
      %v1219 = vadd.f32 %v203, %v1218
      %1220 = vmatprep.mubr.f32.mxu0 0.0
      %1221 = vmatmul.mubr.f32.gmra.mrb[0].mxu0 %v1118
      %v1222 = vpop.f32.mrb[0].mxu0
      %v1223 = vadd.f32 %v199, %v1222
      %v1224 = vpop.f32.mrb[0].mxu0
      %v1225 = vadd.f32 %v203, %v1224
      %1226 = vdwg.mxu0
      %1227 = vmatprep.subr.mxu0 %v182
      %1228 = vmatpush1.msra.mxu0 %v181
      %1229 = vmatprep.subr.mxu0 %v186
      %1230 = vmatpush1.msra.mxu0 %v185
      %1231 = vmatprep.subr.mxu0 %v190
      %1232 = vmatpush1.msra.mxu0 %v189
      %1233 = vmatprep.subr.mxu0 %v249
      %1234 = vmatpush1.msra.mxu0 %v246
      %1235 = vmatprep.subr.mxu0 0.0
      %1236 = vmatpush1.msra.mxu0 0.0
      %1237 = vmatprep.subr.mxu0 0.0
      %1238 = vmatpush1.msra.mxu0 0.0
      %1239 = vmatprep.subr.mxu0 0.0
      %1240 = vmatpush1.msra.mxu0 0.0
      %1241 = vmatprep.subr.mxu0 0.0
      %1242 = vmatpush1.msra.mxu0 0.0
      %1243 = vmatprep.subr.mxu0 0.0
      %1244 = vmatpush1.msra.mxu0 0.0
      %1245 = vmatprep.subr.mxu0 0.0
      %1246 = vmatpush1.msra.mxu0 0.0
      %1247 = vmatprep.subr.mxu0 0.0
      %1248 = vmatpush1.msra.mxu0 0.0
      %1249 = vmatprep.subr.mxu0 0.0
      %1250 = vmatpush1.msra.mxu0 0.0
      %1251 = vmatprep.subr.mxu0 0.0
      %1252 = vmatpush1.msra.mxu0 0.0
      %1253 = vmatprep.subr.mxu0 0.0
      %1254 = vmatpush1.msra.mxu0 0.0
      %1255 = vmatprep.subr.mxu0 0.0
      %1256 = vmatpush1.msra.mxu0 0.0
      %1257 = vmatprep.subr.mxu0 0.0
      %1258 = vmatpush1.msra.mxu0 0.0
      %1259 = vmatprep.subr.mxu0 0.0
      %1260 = vmatpush1.msra.mxu0 0.0
      %1261 = vmatprep.subr.mxu0 0.0
      %1262 = vmatpush1.msra.mxu0 0.0
      %1263 = vmatprep.subr.mxu0 0.0
      %1264 = vmatpush1.msra.mxu0 0.0
      %1265 = vmatprep.subr.mxu0 0.0
      %1266 = vmatpush1.msra.mxu0 0.0
      %1267 = vmatprep.subr.mxu0 0.0
      %1268 = vmatpush1.msra.mxu0 0.0
      %1269 = vmatprep.subr.mxu0 0.0
      %1270 = vmatpush1.msra.mxu0 0.0
      %1271 = vmatprep.subr.mxu0 0.0
      %1272 = vmatpush1.msra.mxu0 0.0
      %1273 = vmatprep.subr.mxu0 0.0
      %1274 = vmatpush1.msra.mxu0 0.0
      %1275 = vmatprep.subr.mxu0 0.0
      %1276 = vmatpush1.msra.mxu0 0.0
      %1277 = vmatprep.subr.mxu0 0.0
      %1278 = vmatpush1.msra.mxu0 0.0
      %1279 = vmatprep.subr.mxu0 0.0
      %1280 = vmatpush1.msra.mxu0 0.0
      %1281 = vmatprep.subr.mxu0 0.0
      %1282 = vmatpush1.msra.mxu0 0.0
      %1283 = vmatprep.subr.mxu0 0.0
      %1284 = vmatpush1.msra.mxu0 0.0
      %1285 = vmatprep.subr.mxu0 0.0
      %1286 = vmatpush1.msra.mxu0 0.0
      %1287 = vmatprep.subr.mxu0 0.0
      %1288 = vmatpush1.msra.mxu0 0.0
      %1289 = vmatprep.subr.mxu0 0.0
      %1290 = vmatpush1.msra.mxu0 0.0
      %1291 = vmatprep.mubr.f32.mxu0 0.0
      %1292 = vmatmul.mubr.f32.gmra.mrb[0].mxu0 %v1100
      %v1293 = vpop.f32.mrb[0].mxu0
      %v1294 = vadd.f32 %v207, %v1293
      %v1295 = vpop.f32.mrb[0].mxu0
      %v1296 = vadd.f32 %v211, %v1295
      %1297 = vmatprep.mubr.f32.mxu0 0.0
      %1298 = vmatmul.mubr.f32.gmra.mrb[0].mxu0 %v1103
      %v1299 = vpop.f32.mrb[0].mxu0
      %v1300 = vadd.f32 %v207, %v1299
      %v1301 = vpop.f32.mrb[0].mxu0
      %v1302 = vadd.f32 %v211, %v1301
      %1303 = vmatprep.mubr.f32.mxu0 0.0
      %1304 = vmatmul.mubr.f32.gmra.mrb[0].mxu0 %v1106
      %v1305 = vpop.f32.mrb[0].mxu0
      %v1306 = vadd.f32 %v207, %v1305
      %v1307 = vpop.f32.mrb[0].mxu0
      %v1308 = vadd.f32 %v211, %v1307
      %1309 = vmatprep.mubr.f32.mxu0 0.0
      %1310 = vmatmul.mubr.f32.gmra.mrb[0].mxu0 %v1109
      %v1311 = vpop.f32.mrb[0].mxu0
      %v1312 = vadd.f32 %v207, %v1311
      %v1313 = vpop.f32.mrb[0].mxu0
      %v1314 = vadd.f32 %v211, %v1313
      %1315 = vmatprep.mubr.f32.mxu0 0.0
      %1316 = vmatmul.mubr.f32.gmra.mrb[0].mxu0 %v1112
      %v1317 = vpop.f32.mrb[0].mxu0
      %v1318 = vadd.f32 %v207, %v1317
      %v1319 = vpop.f32.mrb[0].mxu0
      %v1320 = vadd.f32 %v211, %v1319
      %1321 = vmatprep.mubr.f32.mxu0 0.0
      %1322 = vmatmul.mubr.f32.gmra.mrb[0].mxu0 %v1115
      %v1323 = vpop.f32.mrb[0].mxu0
      %v1324 = vadd.f32 %v207, %v1323
      %v1325 = vpop.f32.mrb[0].mxu0
      %v1326 = vadd.f32 %v211, %v1325
      %1327 = vmatprep.mubr.f32.mxu0 0.0
      %1328 = vmatmul.mubr.f32.gmra.mrb[0].mxu0 %v1118
      %v1329 = vpop.f32.mrb[0].mxu0
      %v1330 = vadd.f32 %v207, %v1329
      %v1331 = vpop.f32.mrb[0].mxu0
      %v1332 = vadd.f32 %v211, %v1331
      %1333 = vdwg.mxu0
      %v1334 = vmax.f32 %v1187, 0.0
      %v1335 = vmax.f32 %v1189, 0.0
      %v1336 = vmax.f32 %v1294, 0.0
      %v1337 = vmax.f32 %v1296, 0.0
      %v1338 = vmax.f32 %v1193, 0.0
      %v1339 = vmax.f32 %v1195, 0.0
      %v1340 = vmax.f32 %v1300, 0.0
      %v1341 = vmax.f32 %v1302, 0.0
      %v1342 = vmax.f32 %v1199, 0.0
      %v1343 = vmax.f32 %v1201, 0.0
      %v1344 = vmax.f32 %v1306, 0.0
      %v1345 = vmax.f32 %v1308, 0.0
      %v1346 = vmax.f32 %v1205, 0.0
      %v1347 = vmax.f32 %v1207, 0.0
      %v1348 = vmax.f32 %v1312, 0.0
      %v1349 = vmax.f32 %v1314, 0.0
      %v1350 = vmax.f32 %v1211, 0.0
      %v1351 = vmax.f32 %v1213, 0.0
      %v1352 = vmax.f32 %v1318, 0.0
      %v1353 = vmax.f32 %v1320, 0.0
      %v1354 = vmax.f32 %v1217, 0.0
      %v1355 = vmax.f32 %v1219, 0.0
      %v1356 = vmax.f32 %v1324, 0.0
      %v1357 = vmax.f32 %v1326, 0.0
      %v1358 = vmax.f32 %v1223, 0.0
      %v1359 = vmax.f32 %v1225, 0.0
      %v1360 = vmax.f32 %v1330, 0.0
      %v1361 = vmax.f32 %v1332, 0.0
      %v1362 = vmax.f32 %v1063, %v1334
      %v1363 = vmax.f32 %v1064, %v1335
      %v1364 = vmax.f32 %v1065, %v1336
      %v1365 = vmax.f32 %v1066, %v1337
      %v1366 = vmax.f32 %v1067, %v1338
      %v1367 = vmax.f32 %v1068, %v1339
      %v1368 = vmax.f32 %v1069, %v1340
      %v1369 = vmax.f32 %v1070, %v1341
      %v1370 = vmax.f32 %v1071, %v1342
      %v1371 = vmax.f32 %v1072, %v1343
      %v1372 = vmax.f32 %v1073, %v1344
      %v1373 = vmax.f32 %v1074, %v1345
      %v1374 = vmax.f32 %v1075, %v1346
      %v1375 = vmax.f32 %v1076, %v1347
      %v1376 = vmax.f32 %v1077, %v1348
      %v1377 = vmax.f32 %v1078, %v1349
      %v1378 = vmax.f32 %v1079, %v1350
      %v1379 = vmax.f32 %v1080, %v1351
      %v1380 = vmax.f32 %v1081, %v1352
      %v1381 = vmax.f32 %v1082, %v1353
      %v1382 = vmax.f32 %v1083, %v1354
      %v1383 = vmax.f32 %v1084, %v1355
      %v1384 = vmax.f32 %v1085, %v1356
      %v1385 = vmax.f32 %v1086, %v1357
      %v1386 = vmax.f32 %v1087, %v1358
      %v1387 = vmax.f32 %v1088, %v1359
      %v1388 = vmax.f32 %v1089, %v1360
      %v1389 = vmax.f32 %v1090, %v1361
      %1390 = vst [vmem:[%s170] sm:$0xff] %v1362
      %1391 = vst [vmem:[%s170 + $0x8] sm:$0xff] %v1363
      %1392 = vst [vmem:[%s170 + $0x10] sm:$0xff] %v1364
      %1393 = vst [vmem:[%s170 + $0x18] sm:$0xff] %v1365
      %1394 = vst [vmem:[%s170 + $0x20] sm:$0xff] %v1366
      %1395 = vst [vmem:[%s170 + $0x28] sm:$0xff] %v1367
      %1396 = vst [vmem:[%s170 + $0x30] sm:$0xff] %v1368
      %1397 = vst [vmem:[%s170 + $0x38] sm:$0xff] %v1369
      %1398 = vst [vmem:[%s170 + $0x40] sm:$0xff] %v1370
      %1399 = vst [vmem:[%s170 + $0x48] sm:$0xff] %v1371
      %1400 = vst [vmem:[%s170 + $0x50] sm:$0xff] %v1372
      %1401 = vst [vmem:[%s170 + $0x58] sm:$0xff] %v1373
      %1402 = vst [vmem:[%s170 + $0x60] sm:$0xff] %v1374
      %1403 = vst [vmem:[%s170 + $0x68] sm:$0xff] %v1375
      %1404 = vst [vmem:[%s170 + $0x70] sm:$0xff] %v1376
      %1405 = vst [vmem:[%s170 + $0x78] sm:$0xff] %v1377
      %1406 = vst [vmem:[%s170 + $0x80] sm:$0xff] %v1378
      %1407 = vst [vmem:[%s170 + $0x88] sm:$0xff] %v1379
      %1408 = vst [vmem:[%s170 + $0x90] sm:$0xff] %v1380
      %1409 = vst [vmem:[%s170 + $0x98] sm:$0xff] %v1381
      %1410 = vst [vmem:[%s170 + $0xa0] sm:$0xff] %v1382
      %1411 = vst [vmem:[%s170 + $0xa8] sm:$0xff] %v1383
      %1412 = vst [vmem:[%s170 + $0xb0] sm:$0xff] %v1384
      %1413 = vst [vmem:[%s170 + $0xb8] sm:$0xff] %v1385
      %1414 = vst [vmem:[%s170 + $0xc0] sm:$0x1] %v1386
      %1415 = vst [vmem:[%s170 + $0xc8] sm:$0x1] %v1387
      %1416 = vst [vmem:[%s170 + $0xd0] sm:$0x1] %v1388
      %1417 = vst [vmem:[%s170 + $0xd8] sm:$0x1] %v1389
      %p1418 = scmp.lt.s32.totalorder %s14, 1
      %s1419 = scalar_select %p1418, %s14, 1
      %s1420 = smul.addr %s1419, 28
      %s1421 = smul.addr %s1420, 8
      %s1422 = scalar_lea.vmem %s3, %s1421
      // Predicated region
      $region33: #{tpu_custom_call.1} parent=31 // pred_check
        %p1423 = pneg %p100
      $region34: #{tpu_custom_call.1} parent=31 // pred_check_branch
        %1425 = sbr.rel (%p1423) target = $region36
      $region35: #{tpu_custom_call.1} parent=31 // pred_region
        _
      $region36: #{tpu_custom_call.1} parent=31 // pred_fallthru
        _
    $region32: #{tpu_custom_call.1} parent=5 // pred_fallthru
      _
    %p1426 = scmp.le.s32.totalorder 2, %s9
    // Predicated region
    $region37: #{tpu_custom_call.1} parent=5 // pred_check
      %p1427 = pneg %p1426
    $region38: #{tpu_custom_call.1} parent=5 // pred_check_branch
      %1429 = sbr.rel (%p1427) target = $region40
    $region39: #{tpu_custom_call.1} parent=5 // pred_region
      %s1430 = ssub.s32 %s9, 2
      // Predicated region
      $region41: #{tpu_custom_call.1} parent=39 // pred_check
        %p1431 = pneg %p106
      $region42: #{tpu_custom_call.1} parent=39 // pred_check_branch
        %1433 = sbr.rel (%p1431) target = $region44
      $region43: #{tpu_custom_call.1} parent=39 // pred_region
        %p1434 = scmp.lt.s32.totalorder %s15, 1
        %s1435 = scalar_select %p1434, %s15, 1
        %s1436 = smul.addr %s1435, 28
        %s1437 = smul.addr %s1436, 8
        %s1438 = scalar_lea.vmem %s3, %s1437
      $region44: #{tpu_custom_call.1} parent=39 // pred_fallthru
        _
    $region40: #{tpu_custom_call.1} parent=5 // pred_fallthru
      _
  $region6: #{tpu_custom_call.1} parent=0 // loop_footer
    %s13 = sadd.s32 1, %s9
  $region7: #{tpu_custom_call.1} parent=0 // loop_footer_branch
    %8 = sbr.rel target = $region3
  $region8: #{tpu_custom_call.1} parent=0 // loop_exit
    _

</llo_original>
